<compile_context>
chip_gen: v7x
topology: tpu7x:2x2x1
jax: 0.10.0
libtpu: 0.0.40
codegen_flags: <defaults>
</compile_context>

<pallas_src>
import functools

import jax
import jax.numpy as jnp
import numpy as np
from jax.experimental import pallas as pl
from jax.experimental.pallas import tpu as pltpu


def _encoder_layer_kernel(x_ref, wqkv_ref, bqkv_ref, wo_ref, bo_ref,
                          w1_ref, b1_ref, w2_ref, b2_ref,
                          g1_ref, be1_ref, g2_ref, be2_ref,
                          o_ref, *, num_heads, d_model, head_dim_p, eps):
    Nb, L, Ep = x_ref.shape                  # (batch-block, tokens, padded E)
    H = num_heads
    Dhp = head_dim_p                         # per-head padded width (multiple of 128)
    Eh = H * Dhp                             # concatenated attention width
    T = Nb * L

    x = x_ref[...].reshape(T, Ep)            # f32; padded lanes are exact zeros
    xb = x.astype(jnp.bfloat16)

    # ---- fused QKV projection (1/sqrt(head_dim) pre-folded into q weights) ----
    qkv_f32 = jnp.dot(xb, wqkv_ref[...],
                      preferred_element_type=jnp.float32) + bqkv_ref[...]   # (T, 3Eh)
    qkv = qkv_f32.astype(jnp.bfloat16)       # cast ONCE; slice q/k/v from bf16 slab

    # ---- multi-head self-attention ----
    # Dhp is a multiple of 128, so every head slice below is 128-lane aligned
    # (plain vreg selection, no masked loads / XLU lane rotates).  Heads stay a
    # short static loop (H is small) of Nb-batched dot_generals; a single 4-D
    # head-batched dot_general would require sublane transposes of the slab,
    # which costs more layout traffic than it saves at these sizes.
    ctx_heads = []
    for h in range(H):
        qh = qkv[:, h * Dhp:(h + 1) * Dhp].reshape(Nb, L, Dhp)
        kh = qkv[:, Eh + h * Dhp:Eh + (h + 1) * Dhp].reshape(Nb, L, Dhp)
        vh = qkv[:, 2 * Eh + h * Dhp:2 * Eh + (h + 1) * Dhp].reshape(Nb, L, Dhp)

        # scores: contract head_dim (full 128-deep K), batch over Nb -> (Nb, L, L)
        s = jax.lax.dot_general(qh, kh, (((2,), (2,)), ((0,), (0,))),
                                preferred_element_type=jnp.float32)
        s = s - jnp.max(s, axis=-1, keepdims=True)
        p = jnp.exp(s)
        p = p * pl.reciprocal(jnp.sum(p, axis=-1, keepdims=True), approx=True)

        # context: (Nb, L, L) @ (Nb, L, Dhp) -> (Nb, L, Dhp)
        ctx = jax.lax.dot_general(p.astype(jnp.bfloat16), vh,
                                  (((2,), (1,)), ((0,), (0,))),
                                  preferred_element_type=jnp.float32)
        ctx_heads.append(ctx.reshape(T, Dhp).astype(jnp.bfloat16))

    # lane-aligned (128-wide chunks) concat, then ONE full-K out-projection.
    ctx_all = jnp.concatenate(ctx_heads, axis=-1) if H > 1 else ctx_heads[0]
    attn = jnp.dot(ctx_all, wo_ref[...],
                   preferred_element_type=jnp.float32) + bo_ref[...]        # (T, Ep)

    # ---- LayerNorm helper (masked statistics over the real d_model lanes) ----
    lane_mask = (jax.lax.broadcasted_iota(jnp.int32, (1, Ep), 1)
                 < d_model).astype(jnp.float32)
    inv_e = 1.0 / float(d_model)

    def layer_norm(t, g, b):
        mu = jnp.sum(t, axis=-1, keepdims=True) * inv_e     # padded lanes are 0
        d = (t - mu) * lane_mask
        var = jnp.sum(d * d, axis=-1, keepdims=True) * inv_e
        # gamma/beta are zero in padded lanes -> padded lanes stay exactly 0
        return (t - mu) * jax.lax.rsqrt(var + eps) * g + b

    # ---- residual + LayerNorm1 (dropout1 = identity at inference) ----
    x1 = layer_norm(x + attn, g1_ref[...], be1_ref[...])

    # ---- feed-forward: linear1 -> relu -> linear2 ----
    h1 = jnp.dot(x1.astype(jnp.bfloat16), w1_ref[...],
                 preferred_element_type=jnp.float32) + b1_ref[...]
    h1 = jnp.maximum(h1, 0.0)
    h2 = jnp.dot(h1.astype(jnp.bfloat16), w2_ref[...],
                 preferred_element_type=jnp.float32) + b2_ref[...]

    # ---- residual + LayerNorm2 (dropout2 = identity at inference) ----
    x2 = layer_norm(x1 + h2, g2_ref[...], be2_ref[...])
    o_ref[...] = x2.reshape(Nb, L, Ep)


def _round_up(n, m):
    return ((n + m - 1) // m) * m


def _pick_block_b(B, Pq, Ep, Eh, Fp, *, target_rows=512,
                  vmem_budget=28 * 1024 * 1024):
    """Batches per grid step: large enough to amortize per-step overhead and fill
    the MXU M dimension, small enough for a conservative (v7x 64 MiB) VMEM
    budget, and capped at ceil(B/2) so the grid has >= 2 parallel steps."""
    # pipelined x/out blocks (f32, double buffered) per batch
    per_b = Pq * Ep * 4 * 2 * 2
    # rough upper bound on simultaneously-live kernel intermediates per batch
    per_b += Pq * (3 * Eh * (4 + 2)          # qkv slab f32 + bf16
                   + Eh * 2                  # concatenated head contexts (bf16)
                   + Pq * 4                  # one head's score tile (f32)
                   + 4 * Ep * 4              # attn / x1 / x1+h2 / out f32 slabs
                   + Fp * 4)                 # FFN hidden (f32)
    # grid-invariant weights (double-buffered blocks; constant index map so they
    # are DMA'd only once, but two buffers are still allocated)
    w_bytes = 2 * 2 * (Ep * 3 * Eh + Eh * Ep + Ep * Fp + Fp * Ep)
    avail = max(vmem_budget - w_bytes, per_b)
    max_b = max(int(avail // per_b), 1)
    want_b = max(target_rows // max(Pq, 1), 1)
    block_b = min(max_b, want_b, B)
    if B >= 2:
        block_b = min(block_b, (B + 1) // 2)   # >= 2 grid steps (v7x megacore)
    return max(block_b, 1)


def transformer_encoder_layer(query, params, *, num_heads):
    """query: (B, C=d_model, Pq) float32 -> output (B, C, Pq), matching torch."""
    B, C, Pq = query.shape
    E = C
    H = num_heads
    assert E % H == 0, "embed_dim must be divisible by num_heads"
    Dh = E // H
    F = params["w1"].shape[0]
    scaling = float(Dh) ** -0.5

    # ---- lane-dense padded dims ----
    Ep = _round_up(E, 128)          # residual / LN / FFN width
    Dhp = _round_up(Dh, 128)        # per-head attention width -> aligned slices
    Eh = H * Dhp                    # concatenated attention width
    Fp = _round_up(F, 128)

    f32, bf16 = jnp.float32, jnp.bfloat16

    # block size / grid (pad B to a multiple of block_b with zero batches)
    block_b = _pick_block_b(B, Pq, Ep, Eh, Fp)
    num_blocks = (B + block_b - 1) // block_b
    Bp = num_blocks * block_b

    # activations: (B, C, Pq) -> (B, Pq, E) -> zero-pad lanes to Ep, batches to Bp
    x = jnp.transpose(query, (0, 2, 1)).astype(f32)
    x = jnp.pad(x, ((0, Bp - B), (0, 0), (0, Ep - E)))

    w_in = params["in_proj_weight"].astype(f32)          # (3E, E)
    b_in = params["in_proj_bias"].astype(f32)            # (3E,)

    def pad_qkv_w(w_t):      # (E, E) -> (Ep, Eh): pad rows + per-head output cols
        w = w_t.reshape(E, H, Dh)
        w = jnp.pad(w, ((0, Ep - E), (0, 0), (0, Dhp - Dh)))
        return w.reshape(Ep, Eh)

    def pad_head_vec(b):     # (E,) -> (Eh,) per-head padded
        return jnp.pad(b.reshape(H, Dh), ((0, 0), (0, Dhp - Dh))).reshape(Eh)

    # fold 1/sqrt(head_dim) into the q weight/bias (one-time host transform)
    wq_t = pad_qkv_w(w_in[:E].T * scaling)
    wk_t = pad_qkv_w(w_in[E:2 * E].T)
    wv_t = pad_qkv_w(w_in[2 * E:].T)
    wqkv_t = jnp.concatenate([wq_t, wk_t, wv_t], axis=1).astype(bf16)   # (Ep, 3Eh)

    bqkv = jnp.concatenate([pad_head_vec(b_in[:E] * scaling),
                            pad_head_vec(b_in[E:2 * E]),
                            pad_head_vec(b_in[2 * E:])])[None, :]       # (1, 3Eh)

    # out projection: rows are head-major context dims -> per-head pad rows
    wo_t = params["out_proj_weight"].astype(f32).T.reshape(H, Dh, E)
    wo_t = jnp.pad(wo_t, ((0, 0), (0, Dhp - Dh), (0, Ep - E)))
    wo_t = wo_t.reshape(Eh, Ep).astype(bf16)
    bo = jnp.pad(params["out_proj_bias"].astype(f32), (0, Ep - E))[None, :]

    w1_t = jnp.pad(params["w1"].astype(f32).T, ((0, Ep - E), (0, Fp - F))).astype(bf16)
    b1 = jnp.pad(params["b1"].astype(f32), (0, Fp - F))[None, :]
    w2_t = jnp.pad(params["w2"].astype(f32).T, ((0, Fp - F), (0, Ep - E))).astype(bf16)
    b2 = jnp.pad(params["b2"].astype(f32), (0, Ep - E))[None, :]

    # LN gammas/betas padded with ZEROS so padded lanes remain exactly zero
    g1 = jnp.pad(params["ln1_w"].astype(f32), (0, Ep - E))[None, :]
    be1 = jnp.pad(params["ln1_b"].astype(f32), (0, Ep - E))[None, :]
    g2 = jnp.pad(params["ln2_w"].astype(f32), (0, Ep - E))[None, :]
    be2 = jnp.pad(params["ln2_b"].astype(f32), (0, Ep - E))[None, :]

    grid = (num_blocks,)

    def full(shape):
        nd = len(shape)
        return pl.BlockSpec(shape, lambda n, _nd=nd: (0,) * _nd)

    kernel = functools.partial(_encoder_layer_kernel, num_heads=H,
                               d_model=E, head_dim_p=Dhp, eps=1e-5)

    # advisory cost hint for the XLA scheduler around the custom call
    flops = int(2 * Bp * Pq * Ep * 3 * Eh            # QKV projection
                + 2 * Bp * H * Pq * Pq * 2 * Dhp     # scores + context
                + 2 * Bp * Pq * Eh * Ep              # out projection
                + 2 * Bp * Pq * (Ep * Fp + Fp * Ep)) # FFN
    bytes_accessed = int(4 * Bp * Pq * Ep * 2
                         + 2 * (Ep * 3 * Eh + Eh * Ep + Ep * Fp + Fp * Ep))
    cost = pl.CostEstimate(flops=flops,
                           transcendentals=int(Bp * H * Pq * Pq),
                           bytes_accessed=bytes_accessed)

    out_p = pl.pallas_call(
        kernel,
        out_shape=jax.ShapeDtypeStruct((Bp, Pq, Ep), f32),
        grid=grid,
        in_specs=[
            pl.BlockSpec((block_b, Pq, Ep), lambda n: (n, 0, 0)),   # x block
            full((Ep, 3 * Eh)), full((1, 3 * Eh)),                  # qkv proj
            full((Eh, Ep)), full((1, Ep)),                          # out proj
            full((Ep, Fp)), full((1, Fp)),                          # linear1
            full((Fp, Ep)), full((1, Ep)),                          # linear2
            full((1, Ep)), full((1, Ep)),                           # layernorm1
            full((1, Ep)), full((1, Ep)),                           # layernorm2
        ],
        out_specs=pl.BlockSpec((block_b, Pq, Ep), lambda n: (n, 0, 0)),
        compiler_params=pltpu.CompilerParams(
            dimension_semantics=("parallel",),
            vmem_limit_bytes=48 * 1024 * 1024),
        cost_estimate=cost,
    )(x, wqkv_t, bqkv, wo_t, bo, w1_t, b1, w2_t, b2, g1, be1, g2, be2)

    return jnp.transpose(out_p[:B, :, :E], (0, 2, 1))               # (B, C, Pq)


# ---------------- pure-JAX f32 reference (for correctness check) ----------------
def reference_forward(x_nle, p, num_heads, eps=1e-5):
    E = x_nle.shape[-1]
    Dh = E // num_heads
    scaling = float(Dh) ** -0.5
    qkv = jnp.einsum("nle,fe->nlf", x_nle, p["in_proj_weight"]) + p["in_proj_bias"]
    q, k, v = qkv[..., :E] * scaling, qkv[..., E:2 * E], qkv[..., 2 * E:]

    def split(t):
        N, L, _ = t.shape
        return t.reshape(N, L, num_heads, Dh).transpose(0, 2, 1, 3)

    qh, kh, vh = split(q), split(k), split(v)
    s = jnp.einsum("nhld,nhmd->nhlm", qh, kh)
    pattn = jax.nn.softmax(s, axis=-1)
    a = jnp.einsum("nhlm,nhmd->nhld", pattn, vh).transpose(0, 2, 1, 3).reshape(x_nle.shape)
    a = jnp.einsum("nle,fe->nlf", a, p["out_proj_weight"]) + p["out_proj_bias"]

    def ln(t, g, b):
        mu = t.mean(-1, keepdims=True)
        var = ((t - mu) ** 2).mean(-1, keepdims=True)
        return (t - mu) / jnp.sqrt(var + eps) * g + b

    x1 = ln(x_nle + a, p["ln1_w"], p["ln1_b"])
    h = jax.nn.relu(jnp.einsum("nle,fe->nlf", x1, p["w1"]) + p["b1"])
    h = jnp.einsum("nlf,ef->nle", h, p["w2"]) + p["b2"]
    return ln(x1 + h, p["ln2_w"], p["ln2_b"])


if __name__ == "__main__":
    key = jax.random.PRNGKey(0)
    B, d_model, nhead, Pq, dff = 2, 32, 4, 16, 64
    keys = jax.random.split(key, 16)

    def u(k, shape, scale=0.1):
        return jax.random.uniform(k, shape, jnp.float32, -scale, scale)

    params = dict(
        in_proj_weight=u(keys[0], (3 * d_model, d_model)),
        in_proj_bias=u(keys[1], (3 * d_model,)),
        out_proj_weight=u(keys[2], (d_model, d_model)),
        out_proj_bias=u(keys[3], (d_model,)),
        w1=u(keys[4], (dff, d_model)),
        b1=u(keys[5], (dff,)),
        w2=u(keys[6], (d_model, dff)),
        b2=u(keys[7], (d_model,)),
        ln1_w=1.0 + u(keys[8], (d_model,)),
        ln1_b=u(keys[9], (d_model,)),
        ln2_w=1.0 + u(keys[10], (d_model,)),
        ln2_b=u(keys[11], (d_model,)),
    )

    query = jax.random.normal(keys[12], (B, d_model, Pq), jnp.float32)      # B C Pq
    query_pos = jax.random.normal(keys[13], (B, Pq, 3), jnp.float32)        # unused (self_posembed=None)

    out = transformer_encoder_layer(query, params, num_heads=nhead)
    out = jax.block_until_ready(out)

    ref = jnp.transpose(
        reference_forward(jnp.transpose(query, (0, 2, 1)), params, nhead), (0, 2, 1))
    # bf16 matmul operands (f32 accumulation) => relaxed tolerance vs f32 reference
    np.testing.assert_allclose(np.asarray(out), np.asarray(ref), rtol=2e-2, atol=2e-2)
    print("KERNEL_OK")
</pallas_src>

<mosaic_0001>
module attributes {stable_mosaic.version = 11 : i64} {
  func.func @_encoder_layer_kernel(%arg0: i32, %arg1: memref<1x16x128xf32, #tpu.memory_space<vmem>>, %arg2: memref<128x1536xbf16, #tpu.memory_space<vmem>>, %arg3: memref<1x1536xf32, #tpu.memory_space<vmem>>, %arg4: memref<512x128xbf16, #tpu.memory_space<vmem>>, %arg5: memref<1x128xf32, #tpu.memory_space<vmem>>, %arg6: memref<128x128xbf16, #tpu.memory_space<vmem>>, %arg7: memref<1x128xf32, #tpu.memory_space<vmem>>, %arg8: memref<128x128xbf16, #tpu.memory_space<vmem>>, %arg9: memref<1x128xf32, #tpu.memory_space<vmem>>, %arg10: memref<1x128xf32, #tpu.memory_space<vmem>>, %arg11: memref<1x128xf32, #tpu.memory_space<vmem>>, %arg12: memref<1x128xf32, #tpu.memory_space<vmem>>, %arg13: memref<1x128xf32, #tpu.memory_space<vmem>>, %arg14: memref<1x16x128xf32, #tpu.memory_space<vmem>>) attributes {dimension_semantics = [#tpu.dimension_semantics<parallel>], iteration_bounds = array<i64: 2>, scalar_prefetch = 0 : i64, scratch_operands = 0 : i64, tpu.core_type = #tpu.core_type<tc>, window_params = [{transform_indices = @transform_0, window_bounds = array<i64: 1, 16, 128>}, {pipeline_mode = #tpu.pipeline_mode<synchronous>, transform_indices = @transform_1, window_bounds = array<i64: 128, 1536>}, {pipeline_mode = #tpu.pipeline_mode<synchronous>, transform_indices = @transform_2, window_bounds = array<i64: 1, 1536>}, {pipeline_mode = #tpu.pipeline_mode<synchronous>, transform_indices = @transform_3, window_bounds = array<i64: 512, 128>}, {pipeline_mode = #tpu.pipeline_mode<synchronous>, transform_indices = @transform_4, window_bounds = array<i64: 1, 128>}, {pipeline_mode = #tpu.pipeline_mode<synchronous>, transform_indices = @transform_5, window_bounds = array<i64: 128, 128>}, {pipeline_mode = #tpu.pipeline_mode<synchronous>, transform_indices = @transform_6, window_bounds = array<i64: 1, 128>}, {pipeline_mode = #tpu.pipeline_mode<synchronous>, transform_indices = @transform_7, window_bounds = array<i64: 128, 128>}, {pipeline_mode = #tpu.pipeline_mode<synchronous>, transform_indices = @transform_8, window_bounds = array<i64: 1, 128>}, {pipeline_mode = #tpu.pipeline_mode<synchronous>, transform_indices = @transform_9, window_bounds = array<i64: 1, 128>}, {pipeline_mode = #tpu.pipeline_mode<synchronous>, transform_indices = @transform_10, window_bounds = array<i64: 1, 128>}, {pipeline_mode = #tpu.pipeline_mode<synchronous>, transform_indices = @transform_11, window_bounds = array<i64: 1, 128>}, {pipeline_mode = #tpu.pipeline_mode<synchronous>, transform_indices = @transform_12, window_bounds = array<i64: 1, 128>}, {transform_indices = @transform_13, window_bounds = array<i64: 1, 16, 128>}]} {
    %c0 = arith.constant 0 : index
    %c0_0 = arith.constant 0 : index
    %c0_1 = arith.constant 0 : index
    %0 = vector.load %arg1[%c0, %c0_0, %c0_1] : memref<1x16x128xf32, #tpu.memory_space<vmem>>, vector<1x16x128xf32>
    %1 = vector.shape_cast %0 : vector<1x16x128xf32> to vector<16x128xf32>
    %2 = arith.truncf %1 : vector<16x128xf32> to vector<16x128xbf16>
    %c0_2 = arith.constant 0 : index
    %c0_3 = arith.constant 0 : index
    %3 = vector.load %arg2[%c0_2, %c0_3] : memref<128x1536xbf16, #tpu.memory_space<vmem>>, vector<128x1536xbf16>
    %cst = arith.constant dense<0.000000e+00> : vector<16x1536xf32>
    %4 = tpu.matmul %2, %3, %cst {dimension_numbers = #tpu.dot_dimension_numbers<[1], [0], [0], [1], [0, 0, 1, 1], [], []>} : vector<16x128xbf16>, vector<128x1536xbf16>, vector<16x1536xf32> -> vector<16x1536xf32>
    %c0_4 = arith.constant 0 : index
    %c0_5 = arith.constant 0 : index
    %5 = vector.load %arg3[%c0_4, %c0_5] : memref<1x1536xf32, #tpu.memory_space<vmem>>, vector<1x1536xf32>
    %6 = vector.broadcast %5 : vector<1x1536xf32> to vector<16x1536xf32>
    %7 = arith.addf %4, %6 : vector<16x1536xf32>
    %8 = arith.truncf %7 : vector<16x1536xf32> to vector<16x1536xbf16>
    %9 = vector.extract_strided_slice %8 {offsets = [0, 0], sizes = [16, 128], strides = [1, 1]} : vector<16x1536xbf16> to vector<16x128xbf16>
    %10 = vector.shape_cast %9 : vector<16x128xbf16> to vector<1x16x128xbf16>
    %11 = vector.extract_strided_slice %8 {offsets = [0, 512], sizes = [16, 128], strides = [1, 1]} : vector<16x1536xbf16> to vector<16x128xbf16>
    %12 = vector.shape_cast %11 : vector<16x128xbf16> to vector<1x16x128xbf16>
    %13 = vector.extract_strided_slice %8 {offsets = [0, 1024], sizes = [16, 128], strides = [1, 1]} : vector<16x1536xbf16> to vector<16x128xbf16>
    %14 = vector.shape_cast %13 : vector<16x128xbf16> to vector<1x16x128xbf16>
    %cst_6 = arith.constant dense<0.000000e+00> : vector<1x16x16xf32>
    %15 = tpu.matmul %10, %12, %cst_6 {dimension_numbers = #tpu.dot_dimension_numbers<[2], [2], [1], [1], [0, 0, 0, 1, 1, 1], [0], [0]>} : vector<1x16x128xbf16>, vector<1x16x128xbf16>, vector<1x16x16xf32> -> vector<1x16x16xf32>
    %cst_7 = arith.constant dense<0xFF800000> : vector<1x16xf32>
    %16 = vector.multi_reduction <maximumf>, %15, %cst_7 [2] : vector<1x16x16xf32> to vector<1x16xf32>
    %17 = vector.shape_cast %16 : vector<1x16xf32> to vector<1x16x1xf32>
    %18 = vector.broadcast %17 : vector<1x16x1xf32> to vector<1x16x16xf32>
    %19 = arith.subf %15, %18 : vector<1x16x16xf32>
    %20 = math.exp %19 : vector<1x16x16xf32>
    %cst_8 = arith.constant dense<0.000000e+00> : vector<1x16xf32>
    %21 = vector.multi_reduction <add>, %20, %cst_8 [2] : vector<1x16x16xf32> to vector<1x16xf32>
    %22 = vector.shape_cast %21 : vector<1x16xf32> to vector<1x16x1xf32>
    %23 = tpu.reciprocal %22 {approx = true} : vector<1x16x1xf32> -> vector<1x16x1xf32>
    %24 = vector.broadcast %23 : vector<1x16x1xf32> to vector<1x16x16xf32>
    %25 = arith.mulf %20, %24 : vector<1x16x16xf32>
    %26 = arith.truncf %25 : vector<1x16x16xf32> to vector<1x16x16xbf16>
    %cst_9 = arith.constant dense<0.000000e+00> : vector<1x16x128xf32>
    %27 = tpu.matmul %26, %14, %cst_9 {dimension_numbers = #tpu.dot_dimension_numbers<[2], [1], [1], [2], [0, 0, 0, 1, 1, 2], [0], [0]>} : vector<1x16x16xbf16>, vector<1x16x128xbf16>, vector<1x16x128xf32> -> vector<1x16x128xf32>
    %28 = vector.shape_cast %27 : vector<1x16x128xf32> to vector<16x128xf32>
    %29 = arith.truncf %28 : vector<16x128xf32> to vector<16x128xbf16>
    %30 = vector.extract_strided_slice %8 {offsets = [0, 128], sizes = [16, 128], strides = [1, 1]} : vector<16x1536xbf16> to vector<16x128xbf16>
    %31 = vector.shape_cast %30 : vector<16x128xbf16> to vector<1x16x128xbf16>
    %32 = vector.extract_strided_slice %8 {offsets = [0, 640], sizes = [16, 128], strides = [1, 1]} : vector<16x1536xbf16> to vector<16x128xbf16>
    %33 = vector.shape_cast %32 : vector<16x128xbf16> to vector<1x16x128xbf16>
    %34 = vector.extract_strided_slice %8 {offsets = [0, 1152], sizes = [16, 128], strides = [1, 1]} : vector<16x1536xbf16> to vector<16x128xbf16>
    %35 = vector.shape_cast %34 : vector<16x128xbf16> to vector<1x16x128xbf16>
    %cst_10 = arith.constant dense<0.000000e+00> : vector<1x16x16xf32>
    %36 = tpu.matmul %31, %33, %cst_10 {dimension_numbers = #tpu.dot_dimension_numbers<[2], [2], [1], [1], [0, 0, 0, 1, 1, 1], [0], [0]>} : vector<1x16x128xbf16>, vector<1x16x128xbf16>, vector<1x16x16xf32> -> vector<1x16x16xf32>
    %cst_11 = arith.constant dense<0xFF800000> : vector<1x16xf32>
    %37 = vector.multi_reduction <maximumf>, %36, %cst_11 [2] : vector<1x16x16xf32> to vector<1x16xf32>
    %38 = vector.shape_cast %37 : vector<1x16xf32> to vector<1x16x1xf32>
    %39 = vector.broadcast %38 : vector<1x16x1xf32> to vector<1x16x16xf32>
    %40 = arith.subf %36, %39 : vector<1x16x16xf32>
    %41 = math.exp %40 : vector<1x16x16xf32>
    %cst_12 = arith.constant dense<0.000000e+00> : vector<1x16xf32>
    %42 = vector.multi_reduction <add>, %41, %cst_12 [2] : vector<1x16x16xf32> to vector<1x16xf32>
    %43 = vector.shape_cast %42 : vector<1x16xf32> to vector<1x16x1xf32>
    %44 = tpu.reciprocal %43 {approx = true} : vector<1x16x1xf32> -> vector<1x16x1xf32>
    %45 = vector.broadcast %44 : vector<1x16x1xf32> to vector<1x16x16xf32>
    %46 = arith.mulf %41, %45 : vector<1x16x16xf32>
    %47 = arith.truncf %46 : vector<1x16x16xf32> to vector<1x16x16xbf16>
    %cst_13 = arith.constant dense<0.000000e+00> : vector<1x16x128xf32>
    %48 = tpu.matmul %47, %35, %cst_13 {dimension_numbers = #tpu.dot_dimension_numbers<[2], [1], [1], [2], [0, 0, 0, 1, 1, 2], [0], [0]>} : vector<1x16x16xbf16>, vector<1x16x128xbf16>, vector<1x16x128xf32> -> vector<1x16x128xf32>
    %49 = vector.shape_cast %48 : vector<1x16x128xf32> to vector<16x128xf32>
    %50 = arith.truncf %49 : vector<16x128xf32> to vector<16x128xbf16>
    %51 = vector.extract_strided_slice %8 {offsets = [0, 256], sizes = [16, 128], strides = [1, 1]} : vector<16x1536xbf16> to vector<16x128xbf16>
    %52 = vector.shape_cast %51 : vector<16x128xbf16> to vector<1x16x128xbf16>
    %53 = vector.extract_strided_slice %8 {offsets = [0, 768], sizes = [16, 128], strides = [1, 1]} : vector<16x1536xbf16> to vector<16x128xbf16>
    %54 = vector.shape_cast %53 : vector<16x128xbf16> to vector<1x16x128xbf16>
    %55 = vector.extract_strided_slice %8 {offsets = [0, 1280], sizes = [16, 128], strides = [1, 1]} : vector<16x1536xbf16> to vector<16x128xbf16>
    %56 = vector.shape_cast %55 : vector<16x128xbf16> to vector<1x16x128xbf16>
    %cst_14 = arith.constant dense<0.000000e+00> : vector<1x16x16xf32>
    %57 = tpu.matmul %52, %54, %cst_14 {dimension_numbers = #tpu.dot_dimension_numbers<[2], [2], [1], [1], [0, 0, 0, 1, 1, 1], [0], [0]>} : vector<1x16x128xbf16>, vector<1x16x128xbf16>, vector<1x16x16xf32> -> vector<1x16x16xf32>
    %cst_15 = arith.constant dense<0xFF800000> : vector<1x16xf32>
    %58 = vector.multi_reduction <maximumf>, %57, %cst_15 [2] : vector<1x16x16xf32> to vector<1x16xf32>
    %59 = vector.shape_cast %58 : vector<1x16xf32> to vector<1x16x1xf32>
    %60 = vector.broadcast %59 : vector<1x16x1xf32> to vector<1x16x16xf32>
    %61 = arith.subf %57, %60 : vector<1x16x16xf32>
    %62 = math.exp %61 : vector<1x16x16xf32>
    %cst_16 = arith.constant dense<0.000000e+00> : vector<1x16xf32>
    %63 = vector.multi_reduction <add>, %62, %cst_16 [2] : vector<1x16x16xf32> to vector<1x16xf32>
    %64 = vector.shape_cast %63 : vector<1x16xf32> to vector<1x16x1xf32>
    %65 = tpu.reciprocal %64 {approx = true} : vector<1x16x1xf32> -> vector<1x16x1xf32>
    %66 = vector.broadcast %65 : vector<1x16x1xf32> to vector<1x16x16xf32>
    %67 = arith.mulf %62, %66 : vector<1x16x16xf32>
    %68 = arith.truncf %67 : vector<1x16x16xf32> to vector<1x16x16xbf16>
    %cst_17 = arith.constant dense<0.000000e+00> : vector<1x16x128xf32>
    %69 = tpu.matmul %68, %56, %cst_17 {dimension_numbers = #tpu.dot_dimension_numbers<[2], [1], [1], [2], [0, 0, 0, 1, 1, 2], [0], [0]>} : vector<1x16x16xbf16>, vector<1x16x128xbf16>, vector<1x16x128xf32> -> vector<1x16x128xf32>
    %70 = vector.shape_cast %69 : vector<1x16x128xf32> to vector<16x128xf32>
    %71 = arith.truncf %70 : vector<16x128xf32> to vector<16x128xbf16>
    %72 = vector.extract_strided_slice %8 {offsets = [0, 384], sizes = [16, 128], strides = [1, 1]} : vector<16x1536xbf16> to vector<16x128xbf16>
    %73 = vector.shape_cast %72 : vector<16x128xbf16> to vector<1x16x128xbf16>
    %74 = vector.extract_strided_slice %8 {offsets = [0, 896], sizes = [16, 128], strides = [1, 1]} : vector<16x1536xbf16> to vector<16x128xbf16>
    %75 = vector.shape_cast %74 : vector<16x128xbf16> to vector<1x16x128xbf16>
    %76 = vector.extract_strided_slice %8 {offsets = [0, 1408], sizes = [16, 128], strides = [1, 1]} : vector<16x1536xbf16> to vector<16x128xbf16>
    %77 = vector.shape_cast %76 : vector<16x128xbf16> to vector<1x16x128xbf16>
    %cst_18 = arith.constant dense<0.000000e+00> : vector<1x16x16xf32>
    %78 = tpu.matmul %73, %75, %cst_18 {dimension_numbers = #tpu.dot_dimension_numbers<[2], [2], [1], [1], [0, 0, 0, 1, 1, 1], [0], [0]>} : vector<1x16x128xbf16>, vector<1x16x128xbf16>, vector<1x16x16xf32> -> vector<1x16x16xf32>
    %cst_19 = arith.constant dense<0xFF800000> : vector<1x16xf32>
    %79 = vector.multi_reduction <maximumf>, %78, %cst_19 [2] : vector<1x16x16xf32> to vector<1x16xf32>
    %80 = vector.shape_cast %79 : vector<1x16xf32> to vector<1x16x1xf32>
    %81 = vector.broadcast %80 : vector<1x16x1xf32> to vector<1x16x16xf32>
    %82 = arith.subf %78, %81 : vector<1x16x16xf32>
    %83 = math.exp %82 : vector<1x16x16xf32>
    %cst_20 = arith.constant dense<0.000000e+00> : vector<1x16xf32>
    %84 = vector.multi_reduction <add>, %83, %cst_20 [2] : vector<1x16x16xf32> to vector<1x16xf32>
    %85 = vector.shape_cast %84 : vector<1x16xf32> to vector<1x16x1xf32>
    %86 = tpu.reciprocal %85 {approx = true} : vector<1x16x1xf32> -> vector<1x16x1xf32>
    %87 = vector.broadcast %86 : vector<1x16x1xf32> to vector<1x16x16xf32>
    %88 = arith.mulf %83, %87 : vector<1x16x16xf32>
    %89 = arith.truncf %88 : vector<1x16x16xf32> to vector<1x16x16xbf16>
    %cst_21 = arith.constant dense<0.000000e+00> : vector<1x16x128xf32>
    %90 = tpu.matmul %89, %77, %cst_21 {dimension_numbers = #tpu.dot_dimension_numbers<[2], [1], [1], [2], [0, 0, 0, 1, 1, 2], [0], [0]>} : vector<1x16x16xbf16>, vector<1x16x128xbf16>, vector<1x16x128xf32> -> vector<1x16x128xf32>
    %91 = vector.shape_cast %90 : vector<1x16x128xf32> to vector<16x128xf32>
    %92 = arith.truncf %91 : vector<16x128xf32> to vector<16x128xbf16>
    %93 = tpu.concatenate %29, %50, %71, %92 in 1 : vector<16x128xbf16>, vector<16x128xbf16>, vector<16x128xbf16>, vector<16x128xbf16> -> vector<16x512xbf16>
    %c0_22 = arith.constant 0 : index
    %c0_23 = arith.constant 0 : index
    %94 = vector.load %arg4[%c0_22, %c0_23] : memref<512x128xbf16, #tpu.memory_space<vmem>>, vector<512x128xbf16>
    %cst_24 = arith.constant dense<0.000000e+00> : vector<16x128xf32>
    %95 = tpu.matmul %93, %94, %cst_24 {dimension_numbers = #tpu.dot_dimension_numbers<[1], [0], [0], [1], [0, 0, 1, 1], [], []>} : vector<16x512xbf16>, vector<512x128xbf16>, vector<16x128xf32> -> vector<16x128xf32>
    %c0_25 = arith.constant 0 : index
    %c0_26 = arith.constant 0 : index
    %96 = vector.load %arg5[%c0_25, %c0_26] : memref<1x128xf32, #tpu.memory_space<vmem>>, vector<1x128xf32>
    %97 = vector.broadcast %96 : vector<1x128xf32> to vector<16x128xf32>
    %98 = arith.addf %95, %97 : vector<16x128xf32>
    %99 = tpu.iota {dimensions = array<i32: 1>} : vector<1x128xi32>
    %c32_i32 = arith.constant 32 : i32
    %100 = vector.broadcast %c32_i32 : i32 to vector<1x128xi32>
    %101 = arith.cmpi slt, %99, %100 : vector<1x128xi32>
    %102 = arith.extui %101 : vector<1x128xi1> to vector<1x128xi32>
    %103 = arith.sitofp %102 : vector<1x128xi32> to vector<1x128xf32>
    %104 = arith.addf %1, %98 : vector<16x128xf32>
    %c0_27 = arith.constant 0 : index
    %c0_28 = arith.constant 0 : index
    %105 = vector.load %arg10[%c0_27, %c0_28] : memref<1x128xf32, #tpu.memory_space<vmem>>, vector<1x128xf32>
    %c0_29 = arith.constant 0 : index
    %c0_30 = arith.constant 0 : index
    %106 = vector.load %arg11[%c0_29, %c0_30] : memref<1x128xf32, #tpu.memory_space<vmem>>, vector<1x128xf32>
    %cst_31 = arith.constant dense<0.000000e+00> : vector<16xf32>
    %107 = vector.multi_reduction <add>, %104, %cst_31 [1] : vector<16x128xf32> to vector<16xf32>
    %108 = vector.shape_cast %107 : vector<16xf32> to vector<16x1xf32>
    %cst_32 = arith.constant 3.125000e-02 : f32
    %109 = vector.broadcast %cst_32 : f32 to vector<16x1xf32>
    %110 = arith.mulf %108, %109 : vector<16x1xf32>
    %111 = vector.broadcast %110 : vector<16x1xf32> to vector<16x128xf32>
    %112 = arith.subf %104, %111 : vector<16x128xf32>
    %113 = vector.broadcast %103 : vector<1x128xf32> to vector<16x128xf32>
    %114 = arith.mulf %112, %113 : vector<16x128xf32>
    %115 = arith.mulf %114, %114 : vector<16x128xf32>
    %cst_33 = arith.constant dense<0.000000e+00> : vector<16xf32>
    %116 = vector.multi_reduction <add>, %115, %cst_33 [1] : vector<16x128xf32> to vector<16xf32>
    %117 = vector.shape_cast %116 : vector<16xf32> to vector<16x1xf32>
    %cst_34 = arith.constant 3.125000e-02 : f32
    %118 = vector.broadcast %cst_34 : f32 to vector<16x1xf32>
    %119 = arith.mulf %117, %118 : vector<16x1xf32>
    %120 = vector.broadcast %110 : vector<16x1xf32> to vector<16x128xf32>
    %121 = arith.subf %104, %120 : vector<16x128xf32>
    %cst_35 = arith.constant 9.99999974E-6 : f32
    %122 = vector.broadcast %cst_35 : f32 to vector<16x1xf32>
    %123 = arith.addf %119, %122 : vector<16x1xf32>
    %124 = math.rsqrt %123 : vector<16x1xf32>
    %125 = vector.broadcast %124 : vector<16x1xf32> to vector<16x128xf32>
    %126 = arith.mulf %121, %125 : vector<16x128xf32>
    %127 = vector.broadcast %105 : vector<1x128xf32> to vector<16x128xf32>
    %128 = arith.mulf %126, %127 : vector<16x128xf32>
    %129 = vector.broadcast %106 : vector<1x128xf32> to vector<16x128xf32>
    %130 = arith.addf %128, %129 : vector<16x128xf32>
    %131 = arith.truncf %130 : vector<16x128xf32> to vector<16x128xbf16>
    %c0_36 = arith.constant 0 : index
    %c0_37 = arith.constant 0 : index
    %132 = vector.load %arg6[%c0_36, %c0_37] : memref<128x128xbf16, #tpu.memory_space<vmem>>, vector<128x128xbf16>
    %cst_38 = arith.constant dense<0.000000e+00> : vector<16x128xf32>
    %133 = tpu.matmul %131, %132, %cst_38 {dimension_numbers = #tpu.dot_dimension_numbers<[1], [0], [0], [1], [0, 0, 1, 1], [], []>} : vector<16x128xbf16>, vector<128x128xbf16>, vector<16x128xf32> -> vector<16x128xf32>
    %c0_39 = arith.constant 0 : index
    %c0_40 = arith.constant 0 : index
    %134 = vector.load %arg7[%c0_39, %c0_40] : memref<1x128xf32, #tpu.memory_space<vmem>>, vector<1x128xf32>
    %135 = vector.broadcast %134 : vector<1x128xf32> to vector<16x128xf32>
    %136 = arith.addf %133, %135 : vector<16x128xf32>
    %cst_41 = arith.constant 0.000000e+00 : f32
    %137 = vector.broadcast %cst_41 : f32 to vector<16x128xf32>
    %138 = arith.maximumf %136, %137 : vector<16x128xf32>
    %139 = arith.truncf %138 : vector<16x128xf32> to vector<16x128xbf16>
    %c0_42 = arith.constant 0 : index
    %c0_43 = arith.constant 0 : index
    %140 = vector.load %arg8[%c0_42, %c0_43] : memref<128x128xbf16, #tpu.memory_space<vmem>>, vector<128x128xbf16>
    %cst_44 = arith.constant dense<0.000000e+00> : vector<16x128xf32>
    %141 = tpu.matmul %139, %140, %cst_44 {dimension_numbers = #tpu.dot_dimension_numbers<[1], [0], [0], [1], [0, 0, 1, 1], [], []>} : vector<16x128xbf16>, vector<128x128xbf16>, vector<16x128xf32> -> vector<16x128xf32>
    %c0_45 = arith.constant 0 : index
    %c0_46 = arith.constant 0 : index
    %142 = vector.load %arg9[%c0_45, %c0_46] : memref<1x128xf32, #tpu.memory_space<vmem>>, vector<1x128xf32>
    %143 = vector.broadcast %142 : vector<1x128xf32> to vector<16x128xf32>
    %144 = arith.addf %141, %143 : vector<16x128xf32>
    %145 = arith.addf %130, %144 : vector<16x128xf32>
    %c0_47 = arith.constant 0 : index
    %c0_48 = arith.constant 0 : index
    %146 = vector.load %arg12[%c0_47, %c0_48] : memref<1x128xf32, #tpu.memory_space<vmem>>, vector<1x128xf32>
    %c0_49 = arith.constant 0 : index
    %c0_50 = arith.constant 0 : index
    %147 = vector.load %arg13[%c0_49, %c0_50] : memref<1x128xf32, #tpu.memory_space<vmem>>, vector<1x128xf32>
    %cst_51 = arith.constant dense<0.000000e+00> : vector<16xf32>
    %148 = vector.multi_reduction <add>, %145, %cst_51 [1] : vector<16x128xf32> to vector<16xf32>
    %149 = vector.shape_cast %148 : vector<16xf32> to vector<16x1xf32>
    %cst_52 = arith.constant 3.125000e-02 : f32
    %150 = vector.broadcast %cst_52 : f32 to vector<16x1xf32>
    %151 = arith.mulf %149, %150 : vector<16x1xf32>
    %152 = vector.broadcast %151 : vector<16x1xf32> to vector<16x128xf32>
    %153 = arith.subf %145, %152 : vector<16x128xf32>
    %154 = vector.broadcast %103 : vector<1x128xf32> to vector<16x128xf32>
    %155 = arith.mulf %153, %154 : vector<16x128xf32>
    %156 = arith.mulf %155, %155 : vector<16x128xf32>
    %cst_53 = arith.constant dense<0.000000e+00> : vector<16xf32>
    %157 = vector.multi_reduction <add>, %156, %cst_53 [1] : vector<16x128xf32> to vector<16xf32>
    %158 = vector.shape_cast %157 : vector<16xf32> to vector<16x1xf32>
    %cst_54 = arith.constant 3.125000e-02 : f32
    %159 = vector.broadcast %cst_54 : f32 to vector<16x1xf32>
    %160 = arith.mulf %158, %159 : vector<16x1xf32>
    %161 = vector.broadcast %151 : vector<16x1xf32> to vector<16x128xf32>
    %162 = arith.subf %145, %161 : vector<16x128xf32>
    %cst_55 = arith.constant 9.99999974E-6 : f32
    %163 = vector.broadcast %cst_55 : f32 to vector<16x1xf32>
    %164 = arith.addf %160, %163 : vector<16x1xf32>
    %165 = math.rsqrt %164 : vector<16x1xf32>
    %166 = vector.broadcast %165 : vector<16x1xf32> to vector<16x128xf32>
    %167 = arith.mulf %162, %166 : vector<16x128xf32>
    %168 = vector.broadcast %146 : vector<1x128xf32> to vector<16x128xf32>
    %169 = arith.mulf %167, %168 : vector<16x128xf32>
    %170 = vector.broadcast %147 : vector<1x128xf32> to vector<16x128xf32>
    %171 = arith.addf %169, %170 : vector<16x128xf32>
    %172 = vector.shape_cast %171 : vector<16x128xf32> to vector<1x16x128xf32>
    %c0_56 = arith.constant 0 : index
    %c0_57 = arith.constant 0 : index
    %c0_58 = arith.constant 0 : index
    %173 = vector.load %arg14[%c0_56, %c0_57, %c0_58] : memref<1x16x128xf32, #tpu.memory_space<vmem>>, vector<1x16x128xf32>
    tpu.vector_store %arg14[%c0_56, %c0_57, %c0_58], %172 {strides = array<i32>} : memref<1x16x128xf32, #tpu.memory_space<vmem>>, vector<1x16x128xf32>,
    return
  }
  func.func @transform_0(%arg0: i32) -> (i32, i32, i32) {
    %c0_i32 = arith.constant 0 : i32
    %c0_i32_0 = arith.constant 0 : i32
    %c0_i32_1 = arith.constant 0 : i32
    return %arg0, %c0_i32, %c0_i32_0 : i32, i32, i32
  }
  func.func @transform_1(%arg0: i32) -> (i32, i32) {
    %c0_i32 = arith.constant 0 : i32
    %c0_i32_0 = arith.constant 0 : i32
    %c0_i32_1 = arith.constant 0 : i32
    return %c0_i32, %c0_i32_0 : i32, i32
  }
  func.func @transform_2(%arg0: i32) -> (i32, i32) {
    %c0_i32 = arith.constant 0 : i32
    %c0_i32_0 = arith.constant 0 : i32
    %c0_i32_1 = arith.constant 0 : i32
    return %c0_i32, %c0_i32_0 : i32, i32
  }
  func.func @transform_3(%arg0: i32) -> (i32, i32) {
    %c0_i32 = arith.constant 0 : i32
    %c0_i32_0 = arith.constant 0 : i32
    %c0_i32_1 = arith.constant 0 : i32
    return %c0_i32, %c0_i32_0 : i32, i32
  }
  func.func @transform_4(%arg0: i32) -> (i32, i32) {
    %c0_i32 = arith.constant 0 : i32
    %c0_i32_0 = arith.constant 0 : i32
    %c0_i32_1 = arith.constant 0 : i32
    return %c0_i32, %c0_i32_0 : i32, i32
  }
  func.func @transform_5(%arg0: i32) -> (i32, i32) {
    %c0_i32 = arith.constant 0 : i32
    %c0_i32_0 = arith.constant 0 : i32
    %c0_i32_1 = arith.constant 0 : i32
    return %c0_i32, %c0_i32_0 : i32, i32
  }
  func.func @transform_6(%arg0: i32) -> (i32, i32) {
    %c0_i32 = arith.constant 0 : i32
    %c0_i32_0 = arith.constant 0 : i32
    %c0_i32_1 = arith.constant 0 : i32
    return %c0_i32, %c0_i32_0 : i32, i32
  }
  func.func @transform_7(%arg0: i32) -> (i32, i32) {
    %c0_i32 = arith.constant 0 : i32
    %c0_i32_0 = arith.constant 0 : i32
    %c0_i32_1 = arith.constant 0 : i32
    return %c0_i32, %c0_i32_0 : i32, i32
  }
  func.func @transform_8(%arg0: i32) -> (i32, i32) {
    %c0_i32 = arith.constant 0 : i32
    %c0_i32_0 = arith.constant 0 : i32
    %c0_i32_1 = arith.constant 0 : i32
    return %c0_i32, %c0_i32_0 : i32, i32
  }
  func.func @transform_9(%arg0: i32) -> (i32, i32) {
    %c0_i32 = arith.constant 0 : i32
    %c0_i32_0 = arith.constant 0 : i32
    %c0_i32_1 = arith.constant 0 : i32
    return %c0_i32, %c0_i32_0 : i32, i32
  }
  func.func @transform_10(%arg0: i32) -> (i32, i32) {
    %c0_i32 = arith.constant 0 : i32
    %c0_i32_0 = arith.constant 0 : i32
    %c0_i32_1 = arith.constant 0 : i32
    return %c0_i32, %c0_i32_0 : i32, i32
  }
  func.func @transform_11(%arg0: i32) -> (i32, i32) {
    %c0_i32 = arith.constant 0 : i32
    %c0_i32_0 = arith.constant 0 : i32
    %c0_i32_1 = arith.constant 0 : i32
    return %c0_i32, %c0_i32_0 : i32, i32
  }
  func.func @transform_12(%arg0: i32) -> (i32, i32) {
    %c0_i32 = arith.constant 0 : i32
    %c0_i32_0 = arith.constant 0 : i32
    %c0_i32_1 = arith.constant 0 : i32
    return %c0_i32, %c0_i32_0 : i32, i32
  }
  func.func @transform_13(%arg0: i32) -> (i32, i32, i32) {
    %c0_i32 = arith.constant 0 : i32
    %c0_i32_0 = arith.constant 0 : i32
    %c0_i32_1 = arith.constant 0 : i32
    return %arg0, %c0_i32, %c0_i32_0 : i32, i32, i32
  }
}

</mosaic_0001>

<llo_original>
// kernel: tpu_custom_call.1
$region0: #{tpu_custom_call.1}
  #allocation0 [shape = 'u32[]', space=smem, size = 0x4, offset = 0x4, fixed_abs, tag = 'smem constant byte address 0x4 - core index']
  #allocation1 [shape = 'u32[144,128]{1,0:T(1,128)}', space=vmem, size = 0x12000, scoped, tag = 'internal scratch']
  %s0 = inlined_call_operand.hbm [shape: f32[2,16,128], index: 0, kind: input, shape index: {}]
  %s1 = inlined_call_operand.hbm [shape: bf16[128,1536], index: 1, kind: input, shape index: {}]
  %s2 = inlined_call_operand.hbm [shape: f32[1,1536], index: 2, kind: input, shape index: {}]
  %s3 = inlined_call_operand.hbm [shape: bf16[512,128], index: 3, kind: input, shape index: {}]
  %s4 = inlined_call_operand.vmem [shape: f32[1,128], index: 4, kind: input, shape index: {}]
  %s5 = inlined_call_operand.hbm [shape: bf16[128,128], index: 5, kind: input, shape index: {}]
  %s6 = inlined_call_operand.vmem [shape: f32[1,128], index: 6, kind: input, shape index: {}]
  %s7 = inlined_call_operand.hbm [shape: bf16[128,128], index: 7, kind: input, shape index: {}]
  %s8 = inlined_call_operand.vmem [shape: f32[1,128], index: 8, kind: input, shape index: {}]
  %s9 = inlined_call_operand.vmem [shape: f32[1,128], index: 9, kind: input, shape index: {}]
  %s10 = inlined_call_operand.vmem [shape: f32[1,128], index: 10, kind: input, shape index: {}]
  %s11 = inlined_call_operand.vmem [shape: f32[1,128], index: 11, kind: input, shape index: {}]
  %s12 = inlined_call_operand.vmem [shape: f32[1,128], index: 12, kind: input, shape index: {}]
  %s13 = inlined_call_operand.hbm [shape: f32[2,16,128], index: 13, kind: output, shape index: {}]
  %s14 = sld [smem:[#allocation0]]
  $region109: #{tpu_custom_call.1} parent=0
    _
  %s16 = ssub.s32 1, %s14
  %s17 = scalar_select 0, %s16, %s14
  $region1: #{tpu_custom_call.1} parent=0
    #allocation2 [shape = 'u8[16384]{0}', space=vmem, size = 0x4000, scoped, tag = 'input window, operand 0']
    #allocation3 [shape = 's32[2]{0}', space=sflag, size = 0x8, scoped, tag = 'scoped memory for tpu_custom_call.1']
    #allocation4 [shape = 's32[2]{0}', space=sflag, size = 0x8, scoped, tag = 'scoped memory for tpu_custom_call.1']
    #allocation5 [shape = 'u8[393216]{0}', space=vmem, size = 0x60000, scoped, tag = 'input window, operand 1, single buffered']
    #allocation6 [shape = 's32[1]{0}', space=sflag, size = 0x4, scoped, tag = 'scoped memory for tpu_custom_call.1']
    #allocation7 [shape = 'u8[6144]{0}', space=vmem, size = 0x1800, scoped, tag = 'input window, operand 2, single buffered']
    #allocation8 [shape = 'u8[131072]{0}', space=vmem, size = 0x20000, scoped, tag = 'input window, operand 3, single buffered']
    #allocation9 [shape = 's32[1]{0}', space=sflag, size = 0x4, scoped, tag = 'scoped memory for tpu_custom_call.1']
    #allocation10 [shape = 'u8[32768]{0}', space=vmem, size = 0x8000, scoped, tag = 'input window, operand 5, single buffered']
    #allocation11 [shape = 'u8[32768]{0}', space=vmem, size = 0x8000, scoped, tag = 'input window, operand 7, single buffered']
    #allocation12 [shape = 's32[1]{0}', space=sflag, size = 0x4, scoped, tag = 'scoped memory for tpu_custom_call.1']
    #allocation13 [shape = 'u8[16384]{0}', space=vmem, size = 0x4000, scoped, tag = 'output window, operand 0']
    %18 = vsyncpa [#allocation3], 0
    %s19 = scalar_lea.sflag [#allocation3], 1
    %20 = vsyncpa %s19, 0
    %21 = vsyncpa [#allocation6], 0
    %22 = vsyncpa [#allocation9], 0
    %23 = vsyncpa [#allocation12], 0
    %24 = vsyncpa [#allocation4], 0
    %s25 = scalar_lea.sflag [#allocation4], 1
    %26 = vsyncpa %s25, 0
    loop: start=0, step=1, limit=4
    $region2: #{tpu_custom_call.1} parent=1 // loop_pre_header
      _
    $region3: #{tpu_custom_call.1} parent=1 // loop_header
      %s28 = sphi 0, %s32
      %p29 = scmp.ge.s32.totalorder %s28, 4
      %s38 = sphi 0, %s40
      %s41 = sphi 0, %s38
      %s42 = sphi 0, %s41
      %s58 = sphi 0, %s42
      %s62 = sphi 0, %s62
      %s64 = sphi 0, %s62
      %s65 = sphi 0, %s64
      %s79 = sphi 0, %s65
      %s83 = sphi 0, %s83
      %s85 = sphi 0, %s83
      %s86 = sphi 0, %s85
      %s100 = sphi 0, %s86
      %s104 = sphi 0, %s104
      %s106 = sphi 0, %s104
      %s107 = sphi 0, %s106
      %s121 = sphi 0, %s107
      %s125 = sphi 0, %s125
      %s127 = sphi 0, %s125
      %s128 = sphi 0, %s127
      %s142 = sphi 0, %s128
      %s146 = sphi 0, %s146
      %s148 = sphi 0, %s146
      %s149 = sphi 0, %s148
      %s163 = sphi 0, %s149
      %s167 = sphi 0, %s167
      %s169 = sphi 0, %s167
      %s170 = sphi 0, %s169
      %s184 = sphi 0, %s170
      %s188 = sphi 0, %s188
      %s190 = sphi 0, %s188
      %s191 = sphi 0, %s190
      %s205 = sphi 0, %s191
      %s209 = sphi 0, %s209
      %s211 = sphi 0, %s209
      %s212 = sphi 0, %s211
      %s226 = sphi 0, %s212
      %s230 = sphi 0, %s230
      %s232 = sphi 0, %s230
      %s233 = sphi 0, %s232
      %s247 = sphi 0, %s233
      %s251 = sphi 0, %s251
      %s253 = sphi 0, %s251
      %s254 = sphi 0, %s253
      %s268 = sphi 0, %s254
      %s272 = sphi 0, %s272
      %s274 = sphi 0, %s272
      %s275 = sphi 0, %s274
      %s289 = sphi 0, %s275
      %s293 = sphi 0, %s293
      %s295 = sphi 0, %s293
      %s296 = sphi 0, %s295
      %s310 = sphi 0, %s296
      %s316 = sphi 0, %s318
      %s319 = sphi 0, %s316
      %s320 = sphi 0, %s319
      %s336 = sphi 0, %s320
    $region4: #{tpu_custom_call.1} parent=1 // loop_header_branch
      %31 = sbr.rel (%p29) target = $region8
    $region5: #{tpu_custom_call.1} parent=1 // loop_body
      %s33 = ssub.s32 %s28, 1
      %s34 = ssub.s32 %s28, 2
      %s35 = sadd.s32 %s28, 1
      %s36 = ssub.s32 %s28, %s35
      %p37 = scmp.eq.s32.totalorder %s36, 0
      %s39 = sadd.s32 %s38, 1
      %s40 = scalar_select %p37, %s38, %s39
      %p43 = pneg %p37
      %p44 = scmp.eq.s32.totalorder %s28, 1
      %p45 = por %p43, %p44
      %p46 = scmp.ne.s32.totalorder %s38, %s41
      %p47 = scmp.eq.s32.totalorder %s28, 0
      %p48 = por %p46, %p47
      %p49 = scmp.ne.s32.totalorder %s38, %s41
      %p50 = scmp.eq.s32.totalorder %s33, 1
      %p51 = por %p49, %p50
      %p52 = scmp.ne.s32.totalorder %s41, %s42
      %p53 = scmp.eq.s32.totalorder %s33, 0
      %p54 = por %p52, %p53
      %p55 = scmp.ne.s32.totalorder %s41, %s42
      %p56 = scmp.eq.s32.totalorder %s34, 1
      %p57 = por %p55, %p56
      %p59 = scmp.ne.s32.totalorder %s42, %s58
      %p60 = scmp.eq.s32.totalorder %s34, 0
      %p61 = por %p59, %p60
      %s63 = sadd.s32 %s62, 1
      %p66 = scmp.eq.s32.totalorder %s28, 1
      %p67 = scmp.ne.s32.totalorder %s62, %s64
      %p68 = scmp.eq.s32.totalorder %s28, 0
      %p69 = por %p67, %p68
      %p70 = scmp.ne.s32.totalorder %s62, %s64
      %p71 = scmp.eq.s32.totalorder %s33, 1
      %p72 = por %p70, %p71
      %p73 = scmp.ne.s32.totalorder %s64, %s65
      %p74 = scmp.eq.s32.totalorder %s33, 0
      %p75 = por %p73, %p74
      %p76 = scmp.ne.s32.totalorder %s64, %s65
      %p77 = scmp.eq.s32.totalorder %s34, 1
      %p78 = por %p76, %p77
      %p80 = scmp.ne.s32.totalorder %s65, %s79
      %p81 = scmp.eq.s32.totalorder %s34, 0
      %p82 = por %p80, %p81
      %s84 = sadd.s32 %s83, 1
      %p87 = scmp.eq.s32.totalorder %s28, 1
      %p88 = scmp.ne.s32.totalorder %s83, %s85
      %p89 = scmp.eq.s32.totalorder %s28, 0
      %p90 = por %p88, %p89
      %p91 = scmp.ne.s32.totalorder %s83, %s85
      %p92 = scmp.eq.s32.totalorder %s33, 1
      %p93 = por %p91, %p92
      %p94 = scmp.ne.s32.totalorder %s85, %s86
      %p95 = scmp.eq.s32.totalorder %s33, 0
      %p96 = por %p94, %p95
      %p97 = scmp.ne.s32.totalorder %s85, %s86
      %p98 = scmp.eq.s32.totalorder %s34, 1
      %p99 = por %p97, %p98
      %p101 = scmp.ne.s32.totalorder %s86, %s100
      %p102 = scmp.eq.s32.totalorder %s34, 0
      %p103 = por %p101, %p102
      %s105 = sadd.s32 %s104, 1
      %p108 = scmp.eq.s32.totalorder %s28, 1
      %p109 = scmp.ne.s32.totalorder %s104, %s106
      %p110 = scmp.eq.s32.totalorder %s28, 0
      %p111 = por %p109, %p110
      %p112 = scmp.ne.s32.totalorder %s104, %s106
      %p113 = scmp.eq.s32.totalorder %s33, 1
      %p114 = por %p112, %p113
      %p115 = scmp.ne.s32.totalorder %s106, %s107
      %p116 = scmp.eq.s32.totalorder %s33, 0
      %p117 = por %p115, %p116
      %p118 = scmp.ne.s32.totalorder %s106, %s107
      %p119 = scmp.eq.s32.totalorder %s34, 1
      %p120 = por %p118, %p119
      %p122 = scmp.ne.s32.totalorder %s107, %s121
      %p123 = scmp.eq.s32.totalorder %s34, 0
      %p124 = por %p122, %p123
      %s126 = sadd.s32 %s125, 1
      %p129 = scmp.eq.s32.totalorder %s28, 1
      %p130 = scmp.ne.s32.totalorder %s125, %s127
      %p131 = scmp.eq.s32.totalorder %s28, 0
      %p132 = por %p130, %p131
      %p133 = scmp.ne.s32.totalorder %s125, %s127
      %p134 = scmp.eq.s32.totalorder %s33, 1
      %p135 = por %p133, %p134
      %p136 = scmp.ne.s32.totalorder %s127, %s128
      %p137 = scmp.eq.s32.totalorder %s33, 0
      %p138 = por %p136, %p137
      %p139 = scmp.ne.s32.totalorder %s127, %s128
      %p140 = scmp.eq.s32.totalorder %s34, 1
      %p141 = por %p139, %p140
      %p143 = scmp.ne.s32.totalorder %s128, %s142
      %p144 = scmp.eq.s32.totalorder %s34, 0
      %p145 = por %p143, %p144
      %s147 = sadd.s32 %s146, 1
      %p150 = scmp.eq.s32.totalorder %s28, 1
      %p151 = scmp.ne.s32.totalorder %s146, %s148
      %p152 = scmp.eq.s32.totalorder %s28, 0
      %p153 = por %p151, %p152
      %p154 = scmp.ne.s32.totalorder %s146, %s148
      %p155 = scmp.eq.s32.totalorder %s33, 1
      %p156 = por %p154, %p155
      %p157 = scmp.ne.s32.totalorder %s148, %s149
      %p158 = scmp.eq.s32.totalorder %s33, 0
      %p159 = por %p157, %p158
      %p160 = scmp.ne.s32.totalorder %s148, %s149
      %p161 = scmp.eq.s32.totalorder %s34, 1
      %p162 = por %p160, %p161
      %p164 = scmp.ne.s32.totalorder %s149, %s163
      %p165 = scmp.eq.s32.totalorder %s34, 0
      %p166 = por %p164, %p165
      %s168 = sadd.s32 %s167, 1
      %p171 = scmp.eq.s32.totalorder %s28, 1
      %p172 = scmp.ne.s32.totalorder %s167, %s169
      %p173 = scmp.eq.s32.totalorder %s28, 0
      %p174 = por %p172, %p173
      %p175 = scmp.ne.s32.totalorder %s167, %s169
      %p176 = scmp.eq.s32.totalorder %s33, 1
      %p177 = por %p175, %p176
      %p178 = scmp.ne.s32.totalorder %s169, %s170
      %p179 = scmp.eq.s32.totalorder %s33, 0
      %p180 = por %p178, %p179
      %p181 = scmp.ne.s32.totalorder %s169, %s170
      %p182 = scmp.eq.s32.totalorder %s34, 1
      %p183 = por %p181, %p182
      %p185 = scmp.ne.s32.totalorder %s170, %s184
      %p186 = scmp.eq.s32.totalorder %s34, 0
      %p187 = por %p185, %p186
      %s189 = sadd.s32 %s188, 1
      %p192 = scmp.eq.s32.totalorder %s28, 1
      %p193 = scmp.ne.s32.totalorder %s188, %s190
      %p194 = scmp.eq.s32.totalorder %s28, 0
      %p195 = por %p193, %p194
      %p196 = scmp.ne.s32.totalorder %s188, %s190
      %p197 = scmp.eq.s32.totalorder %s33, 1
      %p198 = por %p196, %p197
      %p199 = scmp.ne.s32.totalorder %s190, %s191
      %p200 = scmp.eq.s32.totalorder %s33, 0
      %p201 = por %p199, %p200
      %p202 = scmp.ne.s32.totalorder %s190, %s191
      %p203 = scmp.eq.s32.totalorder %s34, 1
      %p204 = por %p202, %p203
      %p206 = scmp.ne.s32.totalorder %s191, %s205
      %p207 = scmp.eq.s32.totalorder %s34, 0
      %p208 = por %p206, %p207
      %s210 = sadd.s32 %s209, 1
      %p213 = scmp.eq.s32.totalorder %s28, 1
      %p214 = scmp.ne.s32.totalorder %s209, %s211
      %p215 = scmp.eq.s32.totalorder %s28, 0
      %p216 = por %p214, %p215
      %p217 = scmp.ne.s32.totalorder %s209, %s211
      %p218 = scmp.eq.s32.totalorder %s33, 1
      %p219 = por %p217, %p218
      %p220 = scmp.ne.s32.totalorder %s211, %s212
      %p221 = scmp.eq.s32.totalorder %s33, 0
      %p222 = por %p220, %p221
      %p223 = scmp.ne.s32.totalorder %s211, %s212
      %p224 = scmp.eq.s32.totalorder %s34, 1
      %p225 = por %p223, %p224
      %p227 = scmp.ne.s32.totalorder %s212, %s226
      %p228 = scmp.eq.s32.totalorder %s34, 0
      %p229 = por %p227, %p228
      %s231 = sadd.s32 %s230, 1
      %p234 = scmp.eq.s32.totalorder %s28, 1
      %p235 = scmp.ne.s32.totalorder %s230, %s232
      %p236 = scmp.eq.s32.totalorder %s28, 0
      %p237 = por %p235, %p236
      %p238 = scmp.ne.s32.totalorder %s230, %s232
      %p239 = scmp.eq.s32.totalorder %s33, 1
      %p240 = por %p238, %p239
      %p241 = scmp.ne.s32.totalorder %s232, %s233
      %p242 = scmp.eq.s32.totalorder %s33, 0
      %p243 = por %p241, %p242
      %p244 = scmp.ne.s32.totalorder %s232, %s233
      %p245 = scmp.eq.s32.totalorder %s34, 1
      %p246 = por %p244, %p245
      %p248 = scmp.ne.s32.totalorder %s233, %s247
      %p249 = scmp.eq.s32.totalorder %s34, 0
      %p250 = por %p248, %p249
      %s252 = sadd.s32 %s251, 1
      %p255 = scmp.eq.s32.totalorder %s28, 1
      %p256 = scmp.ne.s32.totalorder %s251, %s253
      %p257 = scmp.eq.s32.totalorder %s28, 0
      %p258 = por %p256, %p257
      %p259 = scmp.ne.s32.totalorder %s251, %s253
      %p260 = scmp.eq.s32.totalorder %s33, 1
      %p261 = por %p259, %p260
      %p262 = scmp.ne.s32.totalorder %s253, %s254
      %p263 = scmp.eq.s32.totalorder %s33, 0
      %p264 = por %p262, %p263
      %p265 = scmp.ne.s32.totalorder %s253, %s254
      %p266 = scmp.eq.s32.totalorder %s34, 1
      %p267 = por %p265, %p266
      %p269 = scmp.ne.s32.totalorder %s254, %s268
      %p270 = scmp.eq.s32.totalorder %s34, 0
      %p271 = por %p269, %p270
      %s273 = sadd.s32 %s272, 1
      %p276 = scmp.eq.s32.totalorder %s28, 1
      %p277 = scmp.ne.s32.totalorder %s272, %s274
      %p278 = scmp.eq.s32.totalorder %s28, 0
      %p279 = por %p277, %p278
      %p280 = scmp.ne.s32.totalorder %s272, %s274
      %p281 = scmp.eq.s32.totalorder %s33, 1
      %p282 = por %p280, %p281
      %p283 = scmp.ne.s32.totalorder %s274, %s275
      %p284 = scmp.eq.s32.totalorder %s33, 0
      %p285 = por %p283, %p284
      %p286 = scmp.ne.s32.totalorder %s274, %s275
      %p287 = scmp.eq.s32.totalorder %s34, 1
      %p288 = por %p286, %p287
      %p290 = scmp.ne.s32.totalorder %s275, %s289
      %p291 = scmp.eq.s32.totalorder %s34, 0
      %p292 = por %p290, %p291
      %s294 = sadd.s32 %s293, 1
      %p297 = scmp.eq.s32.totalorder %s28, 1
      %p298 = scmp.ne.s32.totalorder %s293, %s295
      %p299 = scmp.eq.s32.totalorder %s28, 0
      %p300 = por %p298, %p299
      %p301 = scmp.ne.s32.totalorder %s293, %s295
      %p302 = scmp.eq.s32.totalorder %s33, 1
      %p303 = por %p301, %p302
      %p304 = scmp.ne.s32.totalorder %s295, %s296
      %p305 = scmp.eq.s32.totalorder %s33, 0
      %p306 = por %p304, %p305
      %p307 = scmp.ne.s32.totalorder %s295, %s296
      %p308 = scmp.eq.s32.totalorder %s34, 1
      %p309 = por %p307, %p308
      %p311 = scmp.ne.s32.totalorder %s296, %s310
      %p312 = scmp.eq.s32.totalorder %s34, 0
      %p313 = por %p311, %p312
      %s314 = ssub.s32 %s28, %s35
      %p315 = scmp.eq.s32.totalorder %s314, 0
      %s317 = sadd.s32 %s316, 1
      %s318 = scalar_select %p315, %s316, %s317
      %p321 = pneg %p315
      %p322 = scmp.eq.s32.totalorder %s28, 1
      %p323 = por %p321, %p322
      %p324 = scmp.ne.s32.totalorder %s316, %s319
      %p325 = scmp.eq.s32.totalorder %s28, 0
      %p326 = por %p324, %p325
      %p327 = scmp.ne.s32.totalorder %s316, %s319
      %p328 = scmp.eq.s32.totalorder %s33, 1
      %p329 = por %p327, %p328
      %p330 = scmp.ne.s32.totalorder %s319, %s320
      %p331 = scmp.eq.s32.totalorder %s33, 0
      %p332 = por %p330, %p331
      %p333 = scmp.ne.s32.totalorder %s319, %s320
      %p334 = scmp.eq.s32.totalorder %s34, 1
      %p335 = por %p333, %p334
      %p337 = scmp.ne.s32.totalorder %s320, %s336
      %p338 = scmp.eq.s32.totalorder %s34, 0
      %p339 = por %p337, %p338
      %p340 = scmp.le.s32.totalorder 1, %s28
      %p341 = scmp.lt.s32.totalorder %s28, 3
      %p342 = pnand %p340, %p341
      %p343 = pneg %p342
      // Predicated region
      $region9: #{tpu_custom_call.1} parent=5 // pred_check
        _
      $region10: #{tpu_custom_call.1} parent=5 // pred_check_branch
        %345 = sbr.rel (%p342) target = $region12
      $region11: #{tpu_custom_call.1} parent=5 // pred_region
        %s346 = ssub.s32 %s28, 1
        // Predicated region
        $region13: #{tpu_custom_call.1} parent=11 // pred_check
          %p347 = pneg %p75
        $region14: #{tpu_custom_call.1} parent=11 // pred_check_branch
          %349 = sbr.rel (%p347) target = $region16
        $region15: #{tpu_custom_call.1} parent=11 // pred_region
          %s351 = ssub.s32 12288, 12288
          %352 = vsyncadd [#allocation6], %s351
          %s353 = sshll.u32 [#allocation5], 4
          %s354 = int_to_ptr.vmem [resolvable:$true] %s353
          %359 = dma.hbm_to_vmem [thread:$0]  %s1, 12288, %s354, [#allocation6], 768, 768, 48
        $region16: #{tpu_custom_call.1} parent=11 // pred_fallthru
          _
        // Predicated region
        $region17: #{tpu_custom_call.1} parent=11 // pred_check
          %p360 = pneg %p96
        $region18: #{tpu_custom_call.1} parent=11 // pred_check_branch
          %362 = sbr.rel (%p360) target = $region20
        $region19: #{tpu_custom_call.1} parent=11 // pred_region
          %s364 = ssub.s32 192, 192
          %365 = vsyncadd [#allocation6], %s364
          %s367 = sshll.u32 [#allocation7], 4
          %s368 = int_to_ptr.vmem [resolvable:$true] %s367
          %370 = dma.hbm_to_vmem [thread:$0]  %s2, 192, %s368, [#allocation6]
        $region20: #{tpu_custom_call.1} parent=11 // pred_fallthru
          _
        // Predicated region
        $region21: #{tpu_custom_call.1} parent=11 // pred_check
          %p371 = pneg %p117
        $region22: #{tpu_custom_call.1} parent=11 // pred_check_branch
          %373 = sbr.rel (%p371) target = $region24
        $region23: #{tpu_custom_call.1} parent=11 // pred_region
          %s375 = ssub.s32 4096, 4096
          %376 = vsyncadd [#allocation9], %s375
          %s377 = sshll.u32 [#allocation8], 4
          %s378 = int_to_ptr.vmem [resolvable:$true] %s377
          %383 = dma.hbm_to_vmem [thread:$0]  %s3, 4096, %s378, [#allocation9], 64, 64, 4
        $region24: #{tpu_custom_call.1} parent=11 // pred_fallthru
          _
        // Predicated region
        $region25: #{tpu_custom_call.1} parent=11 // pred_check
          %p384 = pneg %p138
        $region26: #{tpu_custom_call.1} parent=11 // pred_check_branch
          %386 = sbr.rel (%p384) target = $region28
        $region27: #{tpu_custom_call.1} parent=11 // pred_region
          _
        $region28: #{tpu_custom_call.1} parent=11 // pred_fallthru
          _
        // Predicated region
        $region29: #{tpu_custom_call.1} parent=11 // pred_check
          %p387 = pneg %p159
        $region30: #{tpu_custom_call.1} parent=11 // pred_check_branch
          %389 = sbr.rel (%p387) target = $region32
        $region31: #{tpu_custom_call.1} parent=11 // pred_region
          %s391 = ssub.s32 1024, 1024
          %392 = vsyncadd [#allocation9], %s391
          %s393 = sshll.u32 [#allocation10], 4
          %s394 = int_to_ptr.vmem [resolvable:$true] %s393
          %399 = dma.hbm_to_vmem [thread:$0]  %s5, 1024, %s394, [#allocation9], 64, 64, 4
        $region32: #{tpu_custom_call.1} parent=11 // pred_fallthru
          _
        // Predicated region
        $region33: #{tpu_custom_call.1} parent=11 // pred_check
          %p400 = pneg %p180
        $region34: #{tpu_custom_call.1} parent=11 // pred_check_branch
          %402 = sbr.rel (%p400) target = $region36
        $region35: #{tpu_custom_call.1} parent=11 // pred_region
          _
        $region36: #{tpu_custom_call.1} parent=11 // pred_fallthru
          _
        // Predicated region
        $region37: #{tpu_custom_call.1} parent=11 // pred_check
          %p403 = pneg %p201
        $region38: #{tpu_custom_call.1} parent=11 // pred_check_branch
          %405 = sbr.rel (%p403) target = $region40
        $region39: #{tpu_custom_call.1} parent=11 // pred_region
          %s407 = ssub.s32 1024, 1024
          %408 = vsyncadd [#allocation12], %s407
          %s409 = sshll.u32 [#allocation11], 4
          %s410 = int_to_ptr.vmem [resolvable:$true] %s409
          %415 = dma.hbm_to_vmem [thread:$0]  %s7, 1024, %s410, [#allocation12], 64, 64, 4
        $region40: #{tpu_custom_call.1} parent=11 // pred_fallthru
          _
        // Predicated region
        $region41: #{tpu_custom_call.1} parent=11 // pred_check
          %p416 = pneg %p222
        $region42: #{tpu_custom_call.1} parent=11 // pred_check_branch
          %418 = sbr.rel (%p416) target = $region44
        $region43: #{tpu_custom_call.1} parent=11 // pred_region
          _
        $region44: #{tpu_custom_call.1} parent=11 // pred_fallthru
          _
        // Predicated region
        $region45: #{tpu_custom_call.1} parent=11 // pred_check
          %p419 = pneg %p243
        $region46: #{tpu_custom_call.1} parent=11 // pred_check_branch
          %421 = sbr.rel (%p419) target = $region48
        $region47: #{tpu_custom_call.1} parent=11 // pred_region
          _
        $region48: #{tpu_custom_call.1} parent=11 // pred_fallthru
          _
        // Predicated region
        $region49: #{tpu_custom_call.1} parent=11 // pred_check
          %p422 = pneg %p264
        $region50: #{tpu_custom_call.1} parent=11 // pred_check_branch
          %424 = sbr.rel (%p422) target = $region52
        $region51: #{tpu_custom_call.1} parent=11 // pred_region
          _
        $region52: #{tpu_custom_call.1} parent=11 // pred_fallthru
          _
        // Predicated region
        $region53: #{tpu_custom_call.1} parent=11 // pred_check
          %p425 = pneg %p285
        $region54: #{tpu_custom_call.1} parent=11 // pred_check_branch
          %427 = sbr.rel (%p425) target = $region56
        $region55: #{tpu_custom_call.1} parent=11 // pred_region
          _
        $region56: #{tpu_custom_call.1} parent=11 // pred_fallthru
          _
        // Predicated region
        $region57: #{tpu_custom_call.1} parent=11 // pred_check
          %p428 = pneg %p306
        $region58: #{tpu_custom_call.1} parent=11 // pred_check_branch
          %430 = sbr.rel (%p428) target = $region60
        $region59: #{tpu_custom_call.1} parent=11 // pred_region
          _
        $region60: #{tpu_custom_call.1} parent=11 // pred_fallthru
          _
      $region12: #{tpu_custom_call.1} parent=5 // pred_fallthru
        _
      %p431 = scmp.lt.s32.totalorder %s28, 2
      // Predicated region
      $region61: #{tpu_custom_call.1} parent=5 // pred_check
        %p432 = pneg %p431
      $region62: #{tpu_custom_call.1} parent=5 // pred_check_branch
        %434 = sbr.rel (%p432) target = $region64
      $region63: #{tpu_custom_call.1} parent=5 // pred_region
        // Predicated region
        $region65: #{tpu_custom_call.1} parent=63 // pred_check
          %p435 = pneg %p48
        $region66: #{tpu_custom_call.1} parent=63 // pred_check_branch
          %437 = sbr.rel (%p435) target = $region68
        $region67: #{tpu_custom_call.1} parent=63 // pred_region
          %s438 = sand.u32 %s38, 1
          %s439 = scalar_lea.sflag [#allocation3], %s438
          %s440 = sand.u32 %s38, 1
          %s441 = smul.addr %s440, 16
          %s442 = scalar_lea.vmem [#allocation2], %s441
          %s444 = ssub.s32 256, 256
          %445 = vsyncadd %s439, %s444
          %s446 = smul.addr %s28, 2
          %s447 = smul.addr %s446, 128
          %s448 = scalar_lea.hbm %s0, %s447
          %s449 = sshll.u32 %s442, 4
          %s450 = int_to_ptr.vmem [resolvable:$true] %s449
          %455 = dma.hbm_to_vmem [thread:$0]  %s448, 256, %s450, %s439, 128, 128, 8
        $region68: #{tpu_custom_call.1} parent=63 // pred_fallthru
          _
      $region64: #{tpu_custom_call.1} parent=5 // pred_fallthru
        _
      %p456 = scmp.le.s32.totalorder 1, %s28
      %p457 = scmp.lt.s32.totalorder %s28, 3
      %p458 = pnand %p456, %p457
      %p459 = pneg %p458
      // Predicated region
      $region69: #{tpu_custom_call.1} parent=5 // pred_check
        _
      $region70: #{tpu_custom_call.1} parent=5 // pred_check_branch
        %461 = sbr.rel (%p458) target = $region72
      $region71: #{tpu_custom_call.1} parent=5 // pred_region
        %s462 = ssub.s32 %s28, 1
        %s463 = sand.u32 %s41, 1
        %s464 = scalar_lea.sflag [#allocation3], %s463
        %s465 = sand.u32 %s41, 1
        %s466 = smul.addr %s465, 16
        %s467 = scalar_lea.vmem [#allocation2], %s466
        // Predicated region
        $region73: #{tpu_custom_call.1} parent=71 // pred_check
          %p468 = pneg %p54
        $region74: #{tpu_custom_call.1} parent=71 // pred_check_branch
          %470 = sbr.rel (%p468) target = $region76
        $region75: #{tpu_custom_call.1} parent=71 // pred_region
          %471 = dma.done %s464, 256
        $region76: #{tpu_custom_call.1} parent=71 // pred_fallthru
          _
        // Predicated region
        $region77: #{tpu_custom_call.1} parent=71 // pred_check
          %p472 = pneg %p75
        $region78: #{tpu_custom_call.1} parent=71 // pred_check_branch
          %474 = sbr.rel (%p472) target = $region80
        $region79: #{tpu_custom_call.1} parent=71 // pred_region
          %475 = dma.done [#allocation6], 12288
        $region80: #{tpu_custom_call.1} parent=71 // pred_fallthru
          _
        // Predicated region
        $region81: #{tpu_custom_call.1} parent=71 // pred_check
          %p476 = pneg %p96
        $region82: #{tpu_custom_call.1} parent=71 // pred_check_branch
          %478 = sbr.rel (%p476) target = $region84
        $region83: #{tpu_custom_call.1} parent=71 // pred_region
          %479 = dma.done [#allocation6], 192
        $region84: #{tpu_custom_call.1} parent=71 // pred_fallthru
          _
        // Predicated region
        $region85: #{tpu_custom_call.1} parent=71 // pred_check
          %p480 = pneg %p117
        $region86: #{tpu_custom_call.1} parent=71 // pred_check_branch
          %482 = sbr.rel (%p480) target = $region88
        $region87: #{tpu_custom_call.1} parent=71 // pred_region
          %483 = dma.done [#allocation9], 4096
        $region88: #{tpu_custom_call.1} parent=71 // pred_fallthru
          _
        // Predicated region
        $region89: #{tpu_custom_call.1} parent=71 // pred_check
          %p484 = pneg %p159
        $region90: #{tpu_custom_call.1} parent=71 // pred_check_branch
          %486 = sbr.rel (%p484) target = $region92
        $region91: #{tpu_custom_call.1} parent=71 // pred_region
          %487 = dma.done [#allocation9], 1024
        $region92: #{tpu_custom_call.1} parent=71 // pred_fallthru
          _
        // Predicated region
        $region93: #{tpu_custom_call.1} parent=71 // pred_check
          %p488 = pneg %p201
        $region94: #{tpu_custom_call.1} parent=71 // pred_check_branch
          %490 = sbr.rel (%p488) target = $region96
        $region95: #{tpu_custom_call.1} parent=71 // pred_region
          %491 = dma.done [#allocation12], 1024
        $region96: #{tpu_custom_call.1} parent=71 // pred_fallthru
          _
        %s492 = sand.u32 %s41, 1
        %s493 = scalar_lea.sflag [#allocation3], %s492
        %s494 = sand.u32 %s41, 1
        %s495 = smul.addr %s494, 16
        %s496 = scalar_lea.vmem [#allocation2], %s495
        %p497 = pneg %p54
        %p498 = pneg %p51
        %p499 = pneg %p75
        %p500 = pneg %p72
        %p501 = pneg %p96
        %p502 = pneg %p93
        %p503 = pneg %p117
        %p504 = pneg %p114
        %p505 = pneg %p138
        %p506 = pneg %p135
        %p507 = pneg %p159
        %p508 = pneg %p156
        %p509 = pneg %p180
        %p510 = pneg %p177
        %p511 = pneg %p201
        %p512 = pneg %p198
        %p513 = pneg %p222
        %p514 = pneg %p219
        %p515 = pneg %p243
        %p516 = pneg %p240
        %p517 = pneg %p264
        %p518 = pneg %p261
        %p519 = pneg %p285
        %p520 = pneg %p282
        %p521 = pneg %p306
        %p522 = pneg %p303
        %p523 = pneg %p332
        %p524 = pneg %p329
        %s525 = sand.u32 %s319, 1
        %s526 = scalar_lea.sflag [#allocation4], %s525
        %s527 = sand.u32 %s319, 1
        %s528 = smul.addr %s527, 16
        %s529 = scalar_lea.vmem [#allocation13], %s528
        %v531 = vld [vmem:[%s467] sm:$0xff]
        %v532 = vld [vmem:[%s467 + $0x8] sm:$0xff]
        %v533 = vpack.c.bf16 %v532, %v531
        %v534 = vld [vmem:[#allocation5] sm:$0xff]
        %v535 = vld [vmem:[#allocation5 + $0x8] sm:$0xff]
        %v536 = vld [vmem:[#allocation5 + $0x10] sm:$0xff]
        %v537 = vld [vmem:[#allocation5 + $0x18] sm:$0xff]
        %v538 = vld [vmem:[#allocation5 + $0x20] sm:$0xff]
        %v539 = vld [vmem:[#allocation5 + $0x28] sm:$0xff]
        %v540 = vld [vmem:[#allocation5 + $0x30] sm:$0xff]
        %v541 = vld [vmem:[#allocation5 + $0x38] sm:$0xff]
        %v542 = vld [vmem:[#allocation5 + $0x40] sm:$0xff]
        %v543 = vld [vmem:[#allocation5 + $0x48] sm:$0xff]
        %v544 = vld [vmem:[#allocation5 + $0x50] sm:$0xff]
        %v545 = vld [vmem:[#allocation5 + $0x58] sm:$0xff]
        %v546 = vld [vmem:[#allocation5 + $0x60] sm:$0xff]
        %v547 = vld [vmem:[#allocation5 + $0x68] sm:$0xff]
        %v548 = vld [vmem:[#allocation5 + $0x70] sm:$0xff]
        %v549 = vld [vmem:[#allocation5 + $0x78] sm:$0xff]
        %v550 = vld [vmem:[#allocation5 + $0x80] sm:$0xff]
        %v551 = vld [vmem:[#allocation5 + $0x88] sm:$0xff]
        %v552 = vld [vmem:[#allocation5 + $0x90] sm:$0xff]
        %v553 = vld [vmem:[#allocation5 + $0x98] sm:$0xff]
        %v554 = vld [vmem:[#allocation5 + $0xa0] sm:$0xff]
        %v555 = vld [vmem:[#allocation5 + $0xa8] sm:$0xff]
        %v556 = vld [vmem:[#allocation5 + $0xb0] sm:$0xff]
        %v557 = vld [vmem:[#allocation5 + $0xb8] sm:$0xff]
        %v558 = vld [vmem:[#allocation5 + $0xc0] sm:$0xff]
        %v559 = vld [vmem:[#allocation5 + $0xc8] sm:$0xff]
        %v560 = vld [vmem:[#allocation5 + $0xd0] sm:$0xff]
        %v561 = vld [vmem:[#allocation5 + $0xd8] sm:$0xff]
        %v562 = vld [vmem:[#allocation5 + $0xe0] sm:$0xff]
        %v563 = vld [vmem:[#allocation5 + $0xe8] sm:$0xff]
        %v564 = vld [vmem:[#allocation5 + $0xf0] sm:$0xff]
        %v565 = vld [vmem:[#allocation5 + $0xf8] sm:$0xff]
        %v566 = vld [vmem:[#allocation5 + $0x100] sm:$0xff]
        %v567 = vld [vmem:[#allocation5 + $0x108] sm:$0xff]
        %v568 = vld [vmem:[#allocation5 + $0x110] sm:$0xff]
        %v569 = vld [vmem:[#allocation5 + $0x118] sm:$0xff]
        %v570 = vld [vmem:[#allocation5 + $0x120] sm:$0xff]
        %v571 = vld [vmem:[#allocation5 + $0x128] sm:$0xff]
        %v572 = vld [vmem:[#allocation5 + $0x130] sm:$0xff]
        %v573 = vld [vmem:[#allocation5 + $0x138] sm:$0xff]
        %v574 = vld [vmem:[#allocation5 + $0x140] sm:$0xff]
        %v575 = vld [vmem:[#allocation5 + $0x148] sm:$0xff]
        %v576 = vld [vmem:[#allocation5 + $0x150] sm:$0xff]
        %v577 = vld [vmem:[#allocation5 + $0x158] sm:$0xff]
        %v578 = vld [vmem:[#allocation5 + $0x160] sm:$0xff]
        %v579 = vld [vmem:[#allocation5 + $0x168] sm:$0xff]
        %v580 = vld [vmem:[#allocation5 + $0x170] sm:$0xff]
        %v581 = vld [vmem:[#allocation5 + $0x178] sm:$0xff]
        %v582 = vld [vmem:[#allocation5 + $0x180] sm:$0xff]
        %v583 = vld [vmem:[#allocation5 + $0x188] sm:$0xff]
        %v584 = vld [vmem:[#allocation5 + $0x190] sm:$0xff]
        %v585 = vld [vmem:[#allocation5 + $0x198] sm:$0xff]
        %v586 = vld [vmem:[#allocation5 + $0x1a0] sm:$0xff]
        %v587 = vld [vmem:[#allocation5 + $0x1a8] sm:$0xff]
        %v588 = vld [vmem:[#allocation5 + $0x1b0] sm:$0xff]
        %v589 = vld [vmem:[#allocation5 + $0x1b8] sm:$0xff]
        %v590 = vld [vmem:[#allocation5 + $0x1c0] sm:$0xff]
        %v591 = vld [vmem:[#allocation5 + $0x1c8] sm:$0xff]
        %v592 = vld [vmem:[#allocation5 + $0x1d0] sm:$0xff]
        %v593 = vld [vmem:[#allocation5 + $0x1d8] sm:$0xff]
        %v594 = vld [vmem:[#allocation5 + $0x1e0] sm:$0xff]
        %v595 = vld [vmem:[#allocation5 + $0x1e8] sm:$0xff]
        %v596 = vld [vmem:[#allocation5 + $0x1f0] sm:$0xff]
        %v597 = vld [vmem:[#allocation5 + $0x1f8] sm:$0xff]
        %v598 = vld [vmem:[#allocation5 + $0x200] sm:$0xff]
        %v599 = vld [vmem:[#allocation5 + $0x208] sm:$0xff]
        %v600 = vld [vmem:[#allocation5 + $0x210] sm:$0xff]
        %v601 = vld [vmem:[#allocation5 + $0x218] sm:$0xff]
        %v602 = vld [vmem:[#allocation5 + $0x220] sm:$0xff]
        %v603 = vld [vmem:[#allocation5 + $0x228] sm:$0xff]
        %v604 = vld [vmem:[#allocation5 + $0x230] sm:$0xff]
        %v605 = vld [vmem:[#allocation5 + $0x238] sm:$0xff]
        %v606 = vld [vmem:[#allocation5 + $0x240] sm:$0xff]
        %v607 = vld [vmem:[#allocation5 + $0x248] sm:$0xff]
        %v608 = vld [vmem:[#allocation5 + $0x250] sm:$0xff]
        %v609 = vld [vmem:[#allocation5 + $0x258] sm:$0xff]
        %v610 = vld [vmem:[#allocation5 + $0x260] sm:$0xff]
        %v611 = vld [vmem:[#allocation5 + $0x268] sm:$0xff]
        %v612 = vld [vmem:[#allocation5 + $0x270] sm:$0xff]
        %v613 = vld [vmem:[#allocation5 + $0x278] sm:$0xff]
        %v614 = vld [vmem:[#allocation5 + $0x280] sm:$0xff]
        %v615 = vld [vmem:[#allocation5 + $0x288] sm:$0xff]
        %v616 = vld [vmem:[#allocation5 + $0x290] sm:$0xff]
        %v617 = vld [vmem:[#allocation5 + $0x298] sm:$0xff]
        %v618 = vld [vmem:[#allocation5 + $0x2a0] sm:$0xff]
        %v619 = vld [vmem:[#allocation5 + $0x2a8] sm:$0xff]
        %v620 = vld [vmem:[#allocation5 + $0x2b0] sm:$0xff]
        %v621 = vld [vmem:[#allocation5 + $0x2b8] sm:$0xff]
        %v622 = vld [vmem:[#allocation5 + $0x2c0] sm:$0xff]
        %v623 = vld [vmem:[#allocation5 + $0x2c8] sm:$0xff]
        %v624 = vld [vmem:[#allocation5 + $0x2d0] sm:$0xff]
        %v625 = vld [vmem:[#allocation5 + $0x2d8] sm:$0xff]
        %v626 = vld [vmem:[#allocation5 + $0x2e0] sm:$0xff]
        %v627 = vld [vmem:[#allocation5 + $0x2e8] sm:$0xff]
        %v628 = vld [vmem:[#allocation5 + $0x2f0] sm:$0xff]
        %v629 = vld [vmem:[#allocation5 + $0x2f8] sm:$0xff]
        %v630 = vld [vmem:[#allocation7] sm:$0xff]
        %v631 = vld [vmem:[#allocation7 + $0x8] sm:$0xf]
        %v634 = vlaneseq
        %v635 = vshrl.u32 %v634, 7
        %v636 = vsub.s32 0, %v635
        %v637 = vrot.slane %v630, %v636
        %v638 = vlaneseq
        %v639 = vshrl.u32 %v638, 7
        %v640 = vsub.s32 1, %v639
        %v641 = vrot.slane %v630, %v640
        %v642 = vlaneseq
        %v643 = vshrl.u32 %v642, 7
        %v644 = vsub.s32 2, %v643
        %v645 = vrot.slane %v630, %v644
        %v646 = vlaneseq
        %v647 = vshrl.u32 %v646, 7
        %v648 = vsub.s32 3, %v647
        %v649 = vrot.slane %v630, %v648
        %v650 = vlaneseq
        %v651 = vshrl.u32 %v650, 7
        %v652 = vsub.s32 4, %v651
        %v653 = vrot.slane %v630, %v652
        %v654 = vlaneseq
        %v655 = vshrl.u32 %v654, 7
        %v656 = vsub.s32 5, %v655
        %v657 = vrot.slane %v630, %v656
        %v658 = vlaneseq
        %v659 = vshrl.u32 %v658, 7
        %v660 = vsub.s32 6, %v659
        %v661 = vrot.slane %v630, %v660
        %v662 = vlaneseq
        %v663 = vshrl.u32 %v662, 7
        %v664 = vsub.s32 7, %v663
        %v665 = vrot.slane %v630, %v664
        %v666 = vlaneseq
        %v667 = vshrl.u32 %v666, 7
        %v668 = vsub.s32 0, %v667
        %v669 = vrot.slane %v631, %v668
        %v670 = vlaneseq
        %v671 = vshrl.u32 %v670, 7
        %v672 = vsub.s32 1, %v671
        %v673 = vrot.slane %v631, %v672
        %v674 = vlaneseq
        %v675 = vshrl.u32 %v674, 7
        %v676 = vsub.s32 2, %v675
        %v677 = vrot.slane %v631, %v676
        %v678 = vlaneseq
        %v679 = vshrl.u32 %v678, 7
        %v680 = vsub.s32 3, %v679
        %v681 = vrot.slane %v631, %v680
        %v790 = vunpack.c.l.b16 %v534
        %v791 = vunpack.c.h.b16 %v534
        %v792 = vunpack.c.l.b16 %v535
        %v793 = vunpack.c.h.b16 %v535
        %v794 = vunpack.c.l.b16 %v536
        %v795 = vunpack.c.h.b16 %v536
        %v796 = vunpack.c.l.b16 %v537
        %v797 = vunpack.c.h.b16 %v537
        %v798 = vunpack.c.l.b16 %v538
        %v799 = vunpack.c.h.b16 %v538
        %v800 = vunpack.c.l.b16 %v539
        %v801 = vunpack.c.h.b16 %v539
        %v802 = vunpack.c.l.b16 %v540
        %v803 = vunpack.c.h.b16 %v540
        %v804 = vunpack.c.l.b16 %v541
        %v805 = vunpack.c.h.b16 %v541
        %v806 = vunpack.c.l.b16 %v542
        %v807 = vunpack.c.h.b16 %v542
        %v808 = vunpack.c.l.b16 %v543
        %v809 = vunpack.c.h.b16 %v543
        %v810 = vunpack.c.l.b16 %v544
        %v811 = vunpack.c.h.b16 %v544
        %v812 = vunpack.c.l.b16 %v545
        %v813 = vunpack.c.h.b16 %v545
        %v814 = vunpack.c.l.b16 %v546
        %v815 = vunpack.c.h.b16 %v546
        %v816 = vunpack.c.l.b16 %v547
        %v817 = vunpack.c.h.b16 %v547
        %v818 = vunpack.c.l.b16 %v548
        %v819 = vunpack.c.h.b16 %v548
        %v820 = vunpack.c.l.b16 %v549
        %v821 = vunpack.c.h.b16 %v549
        %v822 = vunpack.c.l.b16 %v550
        %v823 = vunpack.c.h.b16 %v550
        %v824 = vunpack.c.l.b16 %v551
        %v825 = vunpack.c.h.b16 %v551
        %v826 = vunpack.c.l.b16 %v552
        %v827 = vunpack.c.h.b16 %v552
        %v828 = vunpack.c.l.b16 %v553
        %v829 = vunpack.c.h.b16 %v553
        %v830 = vunpack.c.l.b16 %v554
        %v831 = vunpack.c.h.b16 %v554
        %v832 = vunpack.c.l.b16 %v555
        %v833 = vunpack.c.h.b16 %v555
        %v834 = vunpack.c.l.b16 %v556
        %v835 = vunpack.c.h.b16 %v556
        %v836 = vunpack.c.l.b16 %v557
        %v837 = vunpack.c.h.b16 %v557
        %v838 = vunpack.c.l.b16 %v558
        %v839 = vunpack.c.h.b16 %v558
        %v840 = vunpack.c.l.b16 %v559
        %v841 = vunpack.c.h.b16 %v559
        %v842 = vunpack.c.l.b16 %v560
        %v843 = vunpack.c.h.b16 %v560
        %v844 = vunpack.c.l.b16 %v561
        %v845 = vunpack.c.h.b16 %v561
        %v846 = vunpack.c.l.b16 %v562
        %v847 = vunpack.c.h.b16 %v562
        %v848 = vunpack.c.l.b16 %v563
        %v849 = vunpack.c.h.b16 %v563
        %v850 = vunpack.c.l.b16 %v564
        %v851 = vunpack.c.h.b16 %v564
        %v852 = vunpack.c.l.b16 %v565
        %v853 = vunpack.c.h.b16 %v565
        %v854 = vunpack.c.l.b16 %v566
        %v855 = vunpack.c.h.b16 %v566
        %v856 = vunpack.c.l.b16 %v567
        %v857 = vunpack.c.h.b16 %v567
        %v858 = vunpack.c.l.b16 %v568
        %v859 = vunpack.c.h.b16 %v568
        %v860 = vunpack.c.l.b16 %v569
        %v861 = vunpack.c.h.b16 %v569
        %v862 = vunpack.c.l.b16 %v570
        %v863 = vunpack.c.h.b16 %v570
        %v864 = vunpack.c.l.b16 %v571
        %v865 = vunpack.c.h.b16 %v571
        %v866 = vunpack.c.l.b16 %v572
        %v867 = vunpack.c.h.b16 %v572
        %v868 = vunpack.c.l.b16 %v573
        %v869 = vunpack.c.h.b16 %v573
        %v870 = vunpack.c.l.b16 %v574
        %v871 = vunpack.c.h.b16 %v574
        %v872 = vunpack.c.l.b16 %v575
        %v873 = vunpack.c.h.b16 %v575
        %v874 = vunpack.c.l.b16 %v576
        %v875 = vunpack.c.h.b16 %v576
        %v876 = vunpack.c.l.b16 %v577
        %v877 = vunpack.c.h.b16 %v577
        %v878 = vunpack.c.l.b16 %v578
        %v879 = vunpack.c.h.b16 %v578
        %v880 = vunpack.c.l.b16 %v579
        %v881 = vunpack.c.h.b16 %v579
        %v882 = vunpack.c.l.b16 %v580
        %v883 = vunpack.c.h.b16 %v580
        %v884 = vunpack.c.l.b16 %v581
        %v885 = vunpack.c.h.b16 %v581
        %v886 = vunpack.c.l.b16 %v582
        %v887 = vunpack.c.h.b16 %v582
        %v888 = vunpack.c.l.b16 %v583
        %v889 = vunpack.c.h.b16 %v583
        %v890 = vunpack.c.l.b16 %v584
        %v891 = vunpack.c.h.b16 %v584
        %v892 = vunpack.c.l.b16 %v585
        %v893 = vunpack.c.h.b16 %v585
        %v894 = vunpack.c.l.b16 %v586
        %v895 = vunpack.c.h.b16 %v586
        %v896 = vunpack.c.l.b16 %v587
        %v897 = vunpack.c.h.b16 %v587
        %v898 = vunpack.c.l.b16 %v588
        %v899 = vunpack.c.h.b16 %v588
        %v900 = vunpack.c.l.b16 %v589
        %v901 = vunpack.c.h.b16 %v589
        %v902 = vunpack.c.l.b16 %v590
        %v903 = vunpack.c.h.b16 %v590
        %v904 = vunpack.c.l.b16 %v591
        %v905 = vunpack.c.h.b16 %v591
        %v906 = vunpack.c.l.b16 %v592
        %v907 = vunpack.c.h.b16 %v592
        %v908 = vunpack.c.l.b16 %v593
        %v909 = vunpack.c.h.b16 %v593
        %v910 = vunpack.c.l.b16 %v594
        %v911 = vunpack.c.h.b16 %v594
        %v912 = vunpack.c.l.b16 %v595
        %v913 = vunpack.c.h.b16 %v595
        %v914 = vunpack.c.l.b16 %v596
        %v915 = vunpack.c.h.b16 %v596
        %v916 = vunpack.c.l.b16 %v597
        %v917 = vunpack.c.h.b16 %v597
        %v918 = vunpack.c.l.b16 %v598
        %v919 = vunpack.c.h.b16 %v598
        %v920 = vunpack.c.l.b16 %v599
        %v921 = vunpack.c.h.b16 %v599
        %v922 = vunpack.c.l.b16 %v600
        %v923 = vunpack.c.h.b16 %v600
        %v924 = vunpack.c.l.b16 %v601
        %v925 = vunpack.c.h.b16 %v601
        %v926 = vunpack.c.l.b16 %v602
        %v927 = vunpack.c.h.b16 %v602
        %v928 = vunpack.c.l.b16 %v603
        %v929 = vunpack.c.h.b16 %v603
        %v930 = vunpack.c.l.b16 %v604
        %v931 = vunpack.c.h.b16 %v604
        %v932 = vunpack.c.l.b16 %v605
        %v933 = vunpack.c.h.b16 %v605
        %v934 = vunpack.c.l.b16 %v606
        %v935 = vunpack.c.h.b16 %v606
        %v936 = vunpack.c.l.b16 %v607
        %v937 = vunpack.c.h.b16 %v607
        %v938 = vunpack.c.l.b16 %v608
        %v939 = vunpack.c.h.b16 %v608
        %v940 = vunpack.c.l.b16 %v609
        %v941 = vunpack.c.h.b16 %v609
        %v942 = vunpack.c.l.b16 %v610
        %v943 = vunpack.c.h.b16 %v610
        %v944 = vunpack.c.l.b16 %v611
        %v945 = vunpack.c.h.b16 %v611
        %v946 = vunpack.c.l.b16 %v612
        %v947 = vunpack.c.h.b16 %v612
        %v948 = vunpack.c.l.b16 %v613
        %v949 = vunpack.c.h.b16 %v613
        %v950 = vunpack.c.l.b16 %v614
        %v951 = vunpack.c.h.b16 %v614
        %v952 = vunpack.c.l.b16 %v615
        %v953 = vunpack.c.h.b16 %v615
        %v954 = vunpack.c.l.b16 %v616
        %v955 = vunpack.c.h.b16 %v616
        %v956 = vunpack.c.l.b16 %v617
        %v957 = vunpack.c.h.b16 %v617
        %v958 = vunpack.c.l.b16 %v618
        %v959 = vunpack.c.h.b16 %v618
        %v960 = vunpack.c.l.b16 %v619
        %v961 = vunpack.c.h.b16 %v619
        %v962 = vunpack.c.l.b16 %v620
        %v963 = vunpack.c.h.b16 %v620
        %v964 = vunpack.c.l.b16 %v621
        %v965 = vunpack.c.h.b16 %v621
        %v966 = vunpack.c.l.b16 %v622
        %v967 = vunpack.c.h.b16 %v622
        %v968 = vunpack.c.l.b16 %v623
        %v969 = vunpack.c.h.b16 %v623
        %v970 = vunpack.c.l.b16 %v624
        %v971 = vunpack.c.h.b16 %v624
        %v972 = vunpack.c.l.b16 %v625
        %v973 = vunpack.c.h.b16 %v625
        %v974 = vunpack.c.l.b16 %v626
        %v975 = vunpack.c.h.b16 %v626
        %v976 = vunpack.c.l.b16 %v627
        %v977 = vunpack.c.h.b16 %v627
        %v978 = vunpack.c.l.b16 %v628
        %v979 = vunpack.c.h.b16 %v628
        %v980 = vunpack.c.l.b16 %v629
        %v981 = vunpack.c.h.b16 %v629
        %v982 = vpack.c.b16 %v802, %v790
        %v983 = vpack.c.b16 %v803, %v791
        %v984 = vpack.c.b16 %v804, %v792
        %v985 = vpack.c.b16 %v805, %v793
        %v986 = vpack.c.b16 %v806, %v794
        %v987 = vpack.c.b16 %v807, %v795
        %v988 = vpack.c.b16 %v808, %v796
        %v989 = vpack.c.b16 %v809, %v797
        %v990 = vpack.c.b16 %v810, %v798
        %v991 = vpack.c.b16 %v811, %v799
        %v992 = vpack.c.b16 %v812, %v800
        %v993 = vpack.c.b16 %v813, %v801
        %v994 = vpack.c.b16 %v826, %v814
        %v995 = vpack.c.b16 %v827, %v815
        %v996 = vpack.c.b16 %v828, %v816
        %v997 = vpack.c.b16 %v829, %v817
        %v998 = vpack.c.b16 %v830, %v818
        %v999 = vpack.c.b16 %v831, %v819
        %v1000 = vpack.c.b16 %v832, %v820
        %v1001 = vpack.c.b16 %v833, %v821
        %v1002 = vpack.c.b16 %v834, %v822
        %v1003 = vpack.c.b16 %v835, %v823
        %v1004 = vpack.c.b16 %v836, %v824
        %v1005 = vpack.c.b16 %v837, %v825
        %v1006 = vpack.c.b16 %v850, %v838
        %v1007 = vpack.c.b16 %v851, %v839
        %v1008 = vpack.c.b16 %v852, %v840
        %v1009 = vpack.c.b16 %v853, %v841
        %v1010 = vpack.c.b16 %v854, %v842
        %v1011 = vpack.c.b16 %v855, %v843
        %v1012 = vpack.c.b16 %v856, %v844
        %v1013 = vpack.c.b16 %v857, %v845
        %v1014 = vpack.c.b16 %v858, %v846
        %v1015 = vpack.c.b16 %v859, %v847
        %v1016 = vpack.c.b16 %v860, %v848
        %v1017 = vpack.c.b16 %v861, %v849
        %v1018 = vpack.c.b16 %v874, %v862
        %v1019 = vpack.c.b16 %v875, %v863
        %v1020 = vpack.c.b16 %v876, %v864
        %v1021 = vpack.c.b16 %v877, %v865
        %v1022 = vpack.c.b16 %v878, %v866
        %v1023 = vpack.c.b16 %v879, %v867
        %v1024 = vpack.c.b16 %v880, %v868
        %v1025 = vpack.c.b16 %v881, %v869
        %v1026 = vpack.c.b16 %v882, %v870
        %v1027 = vpack.c.b16 %v883, %v871
        %v1028 = vpack.c.b16 %v884, %v872
        %v1029 = vpack.c.b16 %v885, %v873
        %v1030 = vpack.c.b16 %v898, %v886
        %v1031 = vpack.c.b16 %v899, %v887
        %v1032 = vpack.c.b16 %v900, %v888
        %v1033 = vpack.c.b16 %v901, %v889
        %v1034 = vpack.c.b16 %v902, %v890
        %v1035 = vpack.c.b16 %v903, %v891
        %v1036 = vpack.c.b16 %v904, %v892
        %v1037 = vpack.c.b16 %v905, %v893
        %v1038 = vpack.c.b16 %v906, %v894
        %v1039 = vpack.c.b16 %v907, %v895
        %v1040 = vpack.c.b16 %v908, %v896
        %v1041 = vpack.c.b16 %v909, %v897
        %v1042 = vpack.c.b16 %v922, %v910
        %v1043 = vpack.c.b16 %v923, %v911
        %v1044 = vpack.c.b16 %v924, %v912
        %v1045 = vpack.c.b16 %v925, %v913
        %v1046 = vpack.c.b16 %v926, %v914
        %v1047 = vpack.c.b16 %v927, %v915
        %v1048 = vpack.c.b16 %v928, %v916
        %v1049 = vpack.c.b16 %v929, %v917
        %v1050 = vpack.c.b16 %v930, %v918
        %v1051 = vpack.c.b16 %v931, %v919
        %v1052 = vpack.c.b16 %v932, %v920
        %v1053 = vpack.c.b16 %v933, %v921
        %v1054 = vpack.c.b16 %v946, %v934
        %v1055 = vpack.c.b16 %v947, %v935
        %v1056 = vpack.c.b16 %v948, %v936
        %v1057 = vpack.c.b16 %v949, %v937
        %v1058 = vpack.c.b16 %v950, %v938
        %v1059 = vpack.c.b16 %v951, %v939
        %v1060 = vpack.c.b16 %v952, %v940
        %v1061 = vpack.c.b16 %v953, %v941
        %v1062 = vpack.c.b16 %v954, %v942
        %v1063 = vpack.c.b16 %v955, %v943
        %v1064 = vpack.c.b16 %v956, %v944
        %v1065 = vpack.c.b16 %v957, %v945
        %v1066 = vpack.c.b16 %v970, %v958
        %v1067 = vpack.c.b16 %v971, %v959
        %v1068 = vpack.c.b16 %v972, %v960
        %v1069 = vpack.c.b16 %v973, %v961
        %v1070 = vpack.c.b16 %v974, %v962
        %v1071 = vpack.c.b16 %v975, %v963
        %v1072 = vpack.c.b16 %v976, %v964
        %v1073 = vpack.c.b16 %v977, %v965
        %v1074 = vpack.c.b16 %v978, %v966
        %v1075 = vpack.c.b16 %v979, %v967
        %v1076 = vpack.c.b16 %v980, %v968
        %v1077 = vpack.c.b16 %v981, %v969
        %1174 = vmatprep.subr.bf16.mxu0 %v983
        %1175 = vmatpush1.bf16.msra.mxu0 %v982
        %1176 = vmatprep.subr.bf16.mxu0 %v995
        %1177 = vmatpush1.bf16.msra.mxu0 %v994
        %1178 = vmatprep.subr.bf16.mxu0 %v1007
        %1179 = vmatpush1.bf16.msra.mxu0 %v1006
        %1180 = vmatprep.subr.bf16.mxu0 %v1019
        %1181 = vmatpush1.bf16.msra.mxu0 %v1018
        %1182 = vmatprep.subr.bf16.mxu0 %v1031
        %1183 = vmatpush1.bf16.msra.mxu0 %v1030
        %1184 = vmatprep.subr.bf16.mxu0 %v1043
        %1185 = vmatpush1.bf16.msra.mxu0 %v1042
        %1186 = vmatprep.subr.bf16.mxu0 %v1055
        %1187 = vmatpush1.bf16.msra.mxu0 %v1054
        %1188 = vmatprep.subr.bf16.mxu0 %v1067
        %1189 = vmatpush1.bf16.msra.mxu0 %v1066
        %1190 = vmatprep.subr.bf16.mxu0 0
        %1191 = vmatpush1.bf16.msra.mxu0 0
        %1192 = vmatprep.subr.bf16.mxu0 0
        %1193 = vmatpush1.bf16.msra.mxu0 0
        %1194 = vmatprep.subr.bf16.mxu0 0
        %1195 = vmatpush1.bf16.msra.mxu0 0
        %1196 = vmatprep.subr.bf16.mxu0 0
        %1197 = vmatpush1.bf16.msra.mxu0 0
        %1198 = vmatprep.subr.bf16.mxu0 0
        %1199 = vmatpush1.bf16.msra.mxu0 0
        %1200 = vmatprep.subr.bf16.mxu0 0
        %1201 = vmatpush1.bf16.msra.mxu0 0
        %1202 = vmatprep.subr.bf16.mxu0 0
        %1203 = vmatpush1.bf16.msra.mxu0 0
        %1204 = vmatprep.subr.bf16.mxu0 0
        %1205 = vmatpush1.bf16.msra.mxu0 0
        %1206 = vmatprep.mubr.bf16.mxu0 0
        %1207 = vmatmul.mubr.bf16.gmra.mrb[0].mxu0 %v533
        %v1208 = vpop.f32.mrb[0].mxu0
        %v1209 = vadd.f32 %v637, %v1208
        %v1210 = vpop.f32.mrb[0].mxu0
        %v1211 = vadd.f32 %v641, %v1210
        %v1212 = vpop.f32.mrb[0].mxu0
        %v1213 = vadd.f32 %v637, %v1212
        %v1214 = vpop.f32.mrb[0].mxu0
        %v1215 = vadd.f32 %v641, %v1214
        %1216 = vdwg.mxu0
        %1217 = vmatprep.subr.bf16.mxu0 %v985
        %1218 = vmatpush1.bf16.msra.mxu0 %v984
        %1219 = vmatprep.subr.bf16.mxu0 %v997
        %1220 = vmatpush1.bf16.msra.mxu0 %v996
        %1221 = vmatprep.subr.bf16.mxu0 %v1009
        %1222 = vmatpush1.bf16.msra.mxu0 %v1008
        %1223 = vmatprep.subr.bf16.mxu0 %v1021
        %1224 = vmatpush1.bf16.msra.mxu0 %v1020
        %1225 = vmatprep.subr.bf16.mxu0 %v1033
        %1226 = vmatpush1.bf16.msra.mxu0 %v1032
        %1227 = vmatprep.subr.bf16.mxu0 %v1045
        %1228 = vmatpush1.bf16.msra.mxu0 %v1044
        %1229 = vmatprep.subr.bf16.mxu0 %v1057
        %1230 = vmatpush1.bf16.msra.mxu0 %v1056
        %1231 = vmatprep.subr.bf16.mxu0 %v1069
        %1232 = vmatpush1.bf16.msra.mxu0 %v1068
        %1233 = vmatprep.subr.bf16.mxu0 0
        %1234 = vmatpush1.bf16.msra.mxu0 0
        %1235 = vmatprep.subr.bf16.mxu0 0
        %1236 = vmatpush1.bf16.msra.mxu0 0
        %1237 = vmatprep.subr.bf16.mxu0 0
        %1238 = vmatpush1.bf16.msra.mxu0 0
        %1239 = vmatprep.subr.bf16.mxu0 0
        %1240 = vmatpush1.bf16.msra.mxu0 0
        %1241 = vmatprep.subr.bf16.mxu0 0
        %1242 = vmatpush1.bf16.msra.mxu0 0
        %1243 = vmatprep.subr.bf16.mxu0 0
        %1244 = vmatpush1.bf16.msra.mxu0 0
        %1245 = vmatprep.subr.bf16.mxu0 0
        %1246 = vmatpush1.bf16.msra.mxu0 0
        %1247 = vmatprep.subr.bf16.mxu0 0
        %1248 = vmatpush1.bf16.msra.mxu0 0
        %1249 = vmatprep.mubr.bf16.mxu0 0
        %1250 = vmatmul.mubr.bf16.gmra.mrb[0].mxu0 %v533
        %v1251 = vpop.f32.mrb[0].mxu0
        %v1252 = vadd.f32 %v645, %v1251
        %v1253 = vpop.f32.mrb[0].mxu0
        %v1254 = vadd.f32 %v649, %v1253
        %v1255 = vpop.f32.mrb[0].mxu0
        %v1256 = vadd.f32 %v645, %v1255
        %v1257 = vpop.f32.mrb[0].mxu0
        %v1258 = vadd.f32 %v649, %v1257
        %1259 = vdwg.mxu0
        %1260 = vmatprep.subr.bf16.mxu0 %v987
        %1261 = vmatpush1.bf16.msra.mxu0 %v986
        %1262 = vmatprep.subr.bf16.mxu0 %v999
        %1263 = vmatpush1.bf16.msra.mxu0 %v998
        %1264 = vmatprep.subr.bf16.mxu0 %v1011
        %1265 = vmatpush1.bf16.msra.mxu0 %v1010
        %1266 = vmatprep.subr.bf16.mxu0 %v1023
        %1267 = vmatpush1.bf16.msra.mxu0 %v1022
        %1268 = vmatprep.subr.bf16.mxu0 %v1035
        %1269 = vmatpush1.bf16.msra.mxu0 %v1034
        %1270 = vmatprep.subr.bf16.mxu0 %v1047
        %1271 = vmatpush1.bf16.msra.mxu0 %v1046
        %1272 = vmatprep.subr.bf16.mxu0 %v1059
        %1273 = vmatpush1.bf16.msra.mxu0 %v1058
        %1274 = vmatprep.subr.bf16.mxu0 %v1071
        %1275 = vmatpush1.bf16.msra.mxu0 %v1070
        %1276 = vmatprep.subr.bf16.mxu0 0
        %1277 = vmatpush1.bf16.msra.mxu0 0
        %1278 = vmatprep.subr.bf16.mxu0 0
        %1279 = vmatpush1.bf16.msra.mxu0 0
        %1280 = vmatprep.subr.bf16.mxu0 0
        %1281 = vmatpush1.bf16.msra.mxu0 0
        %1282 = vmatprep.subr.bf16.mxu0 0
        %1283 = vmatpush1.bf16.msra.mxu0 0
        %1284 = vmatprep.subr.bf16.mxu0 0
        %1285 = vmatpush1.bf16.msra.mxu0 0
        %1286 = vmatprep.subr.bf16.mxu0 0
        %1287 = vmatpush1.bf16.msra.mxu0 0
        %1288 = vmatprep.subr.bf16.mxu0 0
        %1289 = vmatpush1.bf16.msra.mxu0 0
        %1290 = vmatprep.subr.bf16.mxu0 0
        %1291 = vmatpush1.bf16.msra.mxu0 0
        %1292 = vmatprep.mubr.bf16.mxu0 0
        %1293 = vmatmul.mubr.bf16.gmra.mrb[0].mxu0 %v533
        %v1294 = vpop.f32.mrb[0].mxu0
        %v1295 = vadd.f32 %v653, %v1294
        %v1296 = vpop.f32.mrb[0].mxu0
        %v1297 = vadd.f32 %v657, %v1296
        %v1298 = vpop.f32.mrb[0].mxu0
        %v1299 = vadd.f32 %v653, %v1298
        %v1300 = vpop.f32.mrb[0].mxu0
        %v1301 = vadd.f32 %v657, %v1300
        %1302 = vdwg.mxu0
        %1303 = vmatprep.subr.bf16.mxu0 %v989
        %1304 = vmatpush1.bf16.msra.mxu0 %v988
        %1305 = vmatprep.subr.bf16.mxu0 %v1001
        %1306 = vmatpush1.bf16.msra.mxu0 %v1000
        %1307 = vmatprep.subr.bf16.mxu0 %v1013
        %1308 = vmatpush1.bf16.msra.mxu0 %v1012
        %1309 = vmatprep.subr.bf16.mxu0 %v1025
        %1310 = vmatpush1.bf16.msra.mxu0 %v1024
        %1311 = vmatprep.subr.bf16.mxu0 %v1037
        %1312 = vmatpush1.bf16.msra.mxu0 %v1036
        %1313 = vmatprep.subr.bf16.mxu0 %v1049
        %1314 = vmatpush1.bf16.msra.mxu0 %v1048
        %1315 = vmatprep.subr.bf16.mxu0 %v1061
        %1316 = vmatpush1.bf16.msra.mxu0 %v1060
        %1317 = vmatprep.subr.bf16.mxu0 %v1073
        %1318 = vmatpush1.bf16.msra.mxu0 %v1072
        %1319 = vmatprep.subr.bf16.mxu0 0
        %1320 = vmatpush1.bf16.msra.mxu0 0
        %1321 = vmatprep.subr.bf16.mxu0 0
        %1322 = vmatpush1.bf16.msra.mxu0 0
        %1323 = vmatprep.subr.bf16.mxu0 0
        %1324 = vmatpush1.bf16.msra.mxu0 0
        %1325 = vmatprep.subr.bf16.mxu0 0
        %1326 = vmatpush1.bf16.msra.mxu0 0
        %1327 = vmatprep.subr.bf16.mxu0 0
        %1328 = vmatpush1.bf16.msra.mxu0 0
        %1329 = vmatprep.subr.bf16.mxu0 0
        %1330 = vmatpush1.bf16.msra.mxu0 0
        %1331 = vmatprep.subr.bf16.mxu0 0
        %1332 = vmatpush1.bf16.msra.mxu0 0
        %1333 = vmatprep.subr.bf16.mxu0 0
        %1334 = vmatpush1.bf16.msra.mxu0 0
        %1335 = vmatprep.mubr.bf16.mxu0 0
        %1336 = vmatmul.mubr.bf16.gmra.mrb[0].mxu0 %v533
        %v1337 = vpop.f32.mrb[0].mxu0
        %v1338 = vadd.f32 %v661, %v1337
        %v1339 = vpop.f32.mrb[0].mxu0
        %v1340 = vadd.f32 %v665, %v1339
        %v1341 = vpop.f32.mrb[0].mxu0
        %v1342 = vadd.f32 %v661, %v1341
        %v1343 = vpop.f32.mrb[0].mxu0
        %v1344 = vadd.f32 %v665, %v1343
        %1345 = vdwg.mxu0
        %1346 = vmatprep.subr.bf16.mxu0 %v991
        %1347 = vmatpush1.bf16.msra.mxu0 %v990
        %1348 = vmatprep.subr.bf16.mxu0 %v1003
        %1349 = vmatpush1.bf16.msra.mxu0 %v1002
        %1350 = vmatprep.subr.bf16.mxu0 %v1015
        %1351 = vmatpush1.bf16.msra.mxu0 %v1014
        %1352 = vmatprep.subr.bf16.mxu0 %v1027
        %1353 = vmatpush1.bf16.msra.mxu0 %v1026
        %1354 = vmatprep.subr.bf16.mxu0 %v1039
        %1355 = vmatpush1.bf16.msra.mxu0 %v1038
        %1356 = vmatprep.subr.bf16.mxu0 %v1051
        %1357 = vmatpush1.bf16.msra.mxu0 %v1050
        %1358 = vmatprep.subr.bf16.mxu0 %v1063
        %1359 = vmatpush1.bf16.msra.mxu0 %v1062
        %1360 = vmatprep.subr.bf16.mxu0 %v1075
        %1361 = vmatpush1.bf16.msra.mxu0 %v1074
        %1362 = vmatprep.subr.bf16.mxu0 0
        %1363 = vmatpush1.bf16.msra.mxu0 0
        %1364 = vmatprep.subr.bf16.mxu0 0
        %1365 = vmatpush1.bf16.msra.mxu0 0
        %1366 = vmatprep.subr.bf16.mxu0 0
        %1367 = vmatpush1.bf16.msra.mxu0 0
        %1368 = vmatprep.subr.bf16.mxu0 0
        %1369 = vmatpush1.bf16.msra.mxu0 0
        %1370 = vmatprep.subr.bf16.mxu0 0
        %1371 = vmatpush1.bf16.msra.mxu0 0
        %1372 = vmatprep.subr.bf16.mxu0 0
        %1373 = vmatpush1.bf16.msra.mxu0 0
        %1374 = vmatprep.subr.bf16.mxu0 0
        %1375 = vmatpush1.bf16.msra.mxu0 0
        %1376 = vmatprep.subr.bf16.mxu0 0
        %1377 = vmatpush1.bf16.msra.mxu0 0
        %1378 = vmatprep.mubr.bf16.mxu0 0
        %1379 = vmatmul.mubr.bf16.gmra.mrb[0].mxu0 %v533
        %v1380 = vpop.f32.mrb[0].mxu0
        %v1381 = vadd.f32 %v669, %v1380
        %v1382 = vpop.f32.mrb[0].mxu0
        %v1383 = vadd.f32 %v673, %v1382
        %v1384 = vpop.f32.mrb[0].mxu0
        %v1385 = vadd.f32 %v669, %v1384
        %v1386 = vpop.f32.mrb[0].mxu0
        %v1387 = vadd.f32 %v673, %v1386
        %1388 = vdwg.mxu0
        %1389 = vmatprep.subr.bf16.mxu0 %v993
        %1390 = vmatpush1.bf16.msra.mxu0 %v992
        %1391 = vmatprep.subr.bf16.mxu0 %v1005
        %1392 = vmatpush1.bf16.msra.mxu0 %v1004
        %1393 = vmatprep.subr.bf16.mxu0 %v1017
        %1394 = vmatpush1.bf16.msra.mxu0 %v1016
        %1395 = vmatprep.subr.bf16.mxu0 %v1029
        %1396 = vmatpush1.bf16.msra.mxu0 %v1028
        %1397 = vmatprep.subr.bf16.mxu0 %v1041
        %1398 = vmatpush1.bf16.msra.mxu0 %v1040
        %1399 = vmatprep.subr.bf16.mxu0 %v1053
        %1400 = vmatpush1.bf16.msra.mxu0 %v1052
        %1401 = vmatprep.subr.bf16.mxu0 %v1065
        %1402 = vmatpush1.bf16.msra.mxu0 %v1064
        %1403 = vmatprep.subr.bf16.mxu0 %v1077
        %1404 = vmatpush1.bf16.msra.mxu0 %v1076
        %1405 = vmatprep.subr.bf16.mxu0 0
        %1406 = vmatpush1.bf16.msra.mxu0 0
        %1407 = vmatprep.subr.bf16.mxu0 0
        %1408 = vmatpush1.bf16.msra.mxu0 0
        %1409 = vmatprep.subr.bf16.mxu0 0
        %1410 = vmatpush1.bf16.msra.mxu0 0
        %1411 = vmatprep.subr.bf16.mxu0 0
        %1412 = vmatpush1.bf16.msra.mxu0 0
        %1413 = vmatprep.subr.bf16.mxu0 0
        %1414 = vmatpush1.bf16.msra.mxu0 0
        %1415 = vmatprep.subr.bf16.mxu0 0
        %1416 = vmatpush1.bf16.msra.mxu0 0
        %1417 = vmatprep.subr.bf16.mxu0 0
        %1418 = vmatpush1.bf16.msra.mxu0 0
        %1419 = vmatprep.subr.bf16.mxu0 0
        %1420 = vmatpush1.bf16.msra.mxu0 0
        %1421 = vmatprep.mubr.bf16.mxu0 0
        %1422 = vmatmul.mubr.bf16.gmra.mrb[0].mxu0 %v533
        %v1423 = vpop.f32.mrb[0].mxu0
        %v1424 = vadd.f32 %v677, %v1423
        %v1425 = vpop.f32.mrb[0].mxu0
        %v1426 = vadd.f32 %v681, %v1425
        %v1427 = vpop.f32.mrb[0].mxu0
        %v1428 = vadd.f32 %v677, %v1427
        %v1429 = vpop.f32.mrb[0].mxu0
        %v1430 = vadd.f32 %v681, %v1429
        %1431 = vdwg.mxu0
        %v1432 = vpack.c.bf16 %v1213, %v1209
        %v1433 = vpack.c.bf16 %v1215, %v1211
        %v1434 = vpack.c.bf16 %v1256, %v1252
        %v1435 = vpack.c.bf16 %v1258, %v1254
        %v1436 = vpack.c.bf16 %v1299, %v1295
        %v1437 = vpack.c.bf16 %v1301, %v1297
        %v1438 = vpack.c.bf16 %v1342, %v1338
        %v1439 = vpack.c.bf16 %v1344, %v1340
        %v1440 = vpack.c.bf16 %v1385, %v1381
        %v1441 = vpack.c.bf16 %v1387, %v1383
        %v1442 = vpack.c.bf16 %v1428, %v1424
        %v1443 = vpack.c.bf16 %v1430, %v1426
        %1444 = vmatprep.subr.bf16.mxu0 0
        %1445 = vmatpush1.bf16.xpose.msra.mxu0 %v1436
        %1446 = vmatprep.subr.bf16.mxu0 0
        %1447 = vmatpush1.bf16.xpose.msra.mxu0 0
        %1448 = vmatprep.subr.bf16.mxu0 0
        %1449 = vmatpush1.bf16.xpose.msra.mxu0 0
        %1450 = vmatprep.subr.bf16.mxu0 0
        %1451 = vmatpush1.bf16.xpose.msra.mxu0 0
        %1452 = vmatprep.subr.bf16.mxu0 0
        %1453 = vmatpush1.bf16.xpose.msra.mxu0 0
        %1454 = vmatprep.subr.bf16.mxu0 0
        %1455 = vmatpush1.bf16.xpose.msra.mxu0 0
        %1456 = vmatprep.subr.bf16.mxu0 0
        %1457 = vmatpush1.bf16.xpose.msra.mxu0 0
        %1458 = vmatprep.subr.bf16.mxu0 0
        %1459 = vmatpush1.bf16.xpose.msra.mxu0 0
        %1460 = vmatprep.subr.bf16.mxu0 0
        %1461 = vmatpush1.bf16.xpose.msra.mxu0 0
        %1462 = vmatprep.subr.bf16.mxu0 0
        %1463 = vmatpush1.bf16.xpose.msra.mxu0 0
        %1464 = vmatprep.subr.bf16.mxu0 0
        %1465 = vmatpush1.bf16.xpose.msra.mxu0 0
        %1466 = vmatprep.subr.bf16.mxu0 0
        %1467 = vmatpush1.bf16.xpose.msra.mxu0 0
        %1468 = vmatprep.subr.bf16.mxu0 0
        %1469 = vmatpush1.bf16.xpose.msra.mxu0 0
        %1470 = vmatprep.subr.bf16.mxu0 0
        %1471 = vmatpush1.bf16.xpose.msra.mxu0 0
        %1472 = vmatprep.subr.bf16.mxu0 0
        %1473 = vmatpush1.bf16.xpose.msra.mxu0 0
        %1474 = vmatprep.subr.bf16.mxu0 0
        %1475 = vmatpush1.bf16.xpose.msra.mxu0 0
        %1476 = vmatprep.mubr.bf16.mxu0 0
        %1477 = vmatmul.mubr.bf16.gmra.mrb[0].mxu0 %v1432
        %v1478 = vpop.f32.mrb[0].mxu0
        %v1479 = vadd.f32 0.0, %v1478
        %v1480 = vpop.f32.mrb[0].mxu0
        %v1481 = vpop.f32.mrb[0].mxu0
        %v1482 = vadd.f32 0.0, %v1481
        %v1483 = vpop.f32.mrb[0].mxu0
        %1484 = vdwg.mxu0
        %vm1485 = vcmask 130048
        %v1486 = vsel %vm1485, %v1479, -inf
        %1487 = vmax.xlane.f32.xlu0 %v1486
        %v1488 = vpop.xlane.xlu0 %1487
        %v1489 = vsel %vm1485, %v1482, -inf
        %1490 = vmax.xlane.f32.xlu0 %v1489
        %v1491 = vpop.xlane.xlu0 %1490
        %v1492 = vsub.f32 %v1479, %v1488
        %v1493 = vsub.f32 %v1482, %v1491
        %v1494 = vmul.f32 %v1492, 1.442695
        %v1495 = vpow.pop %v1494
        %v1496 = vmul.f32 %v1493, 1.442695
        %v1497 = vpow.pop %v1496
        %v1498 = vsel %vm1485, %v1495, 0.0
        %1499 = vadd.xlane.f32.xlu0 %v1498
        %v1500 = vpop.xlane.xlu0 %1499
        %v1501 = vsel %vm1485, %v1497, 0.0
        %1502 = vadd.xlane.f32.xlu0 %v1501
        %v1503 = vpop.xlane.xlu0 %1502
        %v1504 = vrcp.pop %v1500
        %v1505 = vrcp.pop %v1503
        %v1506 = vmul.f32 %v1495, %v1504
        %v1507 = vmul.f32 %v1497, %v1505
        %v1508 = vpack.c.bf16 %v1507, %v1506
        %v1510 = vsel %vm1485, %v1508, 0
        %1512 = vmatprep.subr.bf16.mxu0 0
        %1513 = vmatpush1.bf16.msra.mxu0 %v1440
        %1514 = vmatprep.subr.bf16.mxu0 0
        %1515 = vmatpush1.bf16.msra.mxu0 0
        %1516 = vmatprep.subr.bf16.mxu0 0
        %1517 = vmatpush1.bf16.msra.mxu0 0
        %1518 = vmatprep.subr.bf16.mxu0 0
        %1519 = vmatpush1.bf16.msra.mxu0 0
        %1520 = vmatprep.subr.bf16.mxu0 0
        %1521 = vmatpush1.bf16.msra.mxu0 0
        %1522 = vmatprep.subr.bf16.mxu0 0
        %1523 = vmatpush1.bf16.msra.mxu0 0
        %1524 = vmatprep.subr.bf16.mxu0 0
        %1525 = vmatpush1.bf16.msra.mxu0 0
        %1526 = vmatprep.subr.bf16.mxu0 0
        %1527 = vmatpush1.bf16.msra.mxu0 0
        %1528 = vmatprep.subr.bf16.mxu0 0
        %1529 = vmatpush1.bf16.msra.mxu0 0
        %1530 = vmatprep.subr.bf16.mxu0 0
        %1531 = vmatpush1.bf16.msra.mxu0 0
        %1532 = vmatprep.subr.bf16.mxu0 0
        %1533 = vmatpush1.bf16.msra.mxu0 0
        %1534 = vmatprep.subr.bf16.mxu0 0
        %1535 = vmatpush1.bf16.msra.mxu0 0
        %1536 = vmatprep.subr.bf16.mxu0 0
        %1537 = vmatpush1.bf16.msra.mxu0 0
        %1538 = vmatprep.subr.bf16.mxu0 0
        %1539 = vmatpush1.bf16.msra.mxu0 0
        %1540 = vmatprep.subr.bf16.mxu0 0
        %1541 = vmatpush1.bf16.msra.mxu0 0
        %1542 = vmatprep.subr.bf16.mxu0 0
        %1543 = vmatpush1.bf16.msra.mxu0 0
        %1544 = vmatprep.mubr.bf16.mxu0 0
        %1545 = vmatmul.mubr.bf16.gmra.mrb[0].mxu0 %v1510
        %v1546 = vpop.f32.mrb[0].mxu0
        %v1547 = vadd.f32 0.0, %v1546
        %v1548 = vpop.f32.mrb[0].mxu0
        %v1549 = vpop.f32.mrb[0].mxu0
        %v1550 = vadd.f32 0.0, %v1549
        %v1551 = vpop.f32.mrb[0].mxu0
        %1552 = vdwg.mxu0
        %v1553 = vpack.c.bf16 %v1550, %v1547
        %1554 = vmatprep.subr.bf16.mxu0 0
        %1555 = vmatpush1.bf16.xpose.msra.mxu0 %v1437
        %1556 = vmatprep.subr.bf16.mxu0 0
        %1557 = vmatpush1.bf16.xpose.msra.mxu0 0
        %1558 = vmatprep.subr.bf16.mxu0 0
        %1559 = vmatpush1.bf16.xpose.msra.mxu0 0
        %1560 = vmatprep.subr.bf16.mxu0 0
        %1561 = vmatpush1.bf16.xpose.msra.mxu0 0
        %1562 = vmatprep.subr.bf16.mxu0 0
        %1563 = vmatpush1.bf16.xpose.msra.mxu0 0
        %1564 = vmatprep.subr.bf16.mxu0 0
        %1565 = vmatpush1.bf16.xpose.msra.mxu0 0
        %1566 = vmatprep.subr.bf16.mxu0 0
        %1567 = vmatpush1.bf16.xpose.msra.mxu0 0
        %1568 = vmatprep.subr.bf16.mxu0 0
        %1569 = vmatpush1.bf16.xpose.msra.mxu0 0
        %1570 = vmatprep.subr.bf16.mxu0 0
        %1571 = vmatpush1.bf16.xpose.msra.mxu0 0
        %1572 = vmatprep.subr.bf16.mxu0 0
        %1573 = vmatpush1.bf16.xpose.msra.mxu0 0
        %1574 = vmatprep.subr.bf16.mxu0 0
        %1575 = vmatpush1.bf16.xpose.msra.mxu0 0
        %1576 = vmatprep.subr.bf16.mxu0 0
        %1577 = vmatpush1.bf16.xpose.msra.mxu0 0
        %1578 = vmatprep.subr.bf16.mxu0 0
        %1579 = vmatpush1.bf16.xpose.msra.mxu0 0
        %1580 = vmatprep.subr.bf16.mxu0 0
        %1581 = vmatpush1.bf16.xpose.msra.mxu0 0
        %1582 = vmatprep.subr.bf16.mxu0 0
        %1583 = vmatpush1.bf16.xpose.msra.mxu0 0
        %1584 = vmatprep.subr.bf16.mxu0 0
        %1585 = vmatpush1.bf16.xpose.msra.mxu0 0
        %1586 = vmatprep.mubr.bf16.mxu0 0
        %1587 = vmatmul.mubr.bf16.gmra.mrb[0].mxu0 %v1433
        %v1588 = vpop.f32.mrb[0].mxu0
        %v1589 = vadd.f32 0.0, %v1588
        %v1590 = vpop.f32.mrb[0].mxu0
        %v1591 = vpop.f32.mrb[0].mxu0
        %v1592 = vadd.f32 0.0, %v1591
        %v1593 = vpop.f32.mrb[0].mxu0
        %1594 = vdwg.mxu0
        %v1595 = vsel %vm1485, %v1589, -inf
        %1596 = vmax.xlane.f32.xlu0 %v1595
        %v1597 = vpop.xlane.xlu0 %1596
        %v1598 = vsel %vm1485, %v1592, -inf
        %1599 = vmax.xlane.f32.xlu0 %v1598
        %v1600 = vpop.xlane.xlu0 %1599
        %v1601 = vsub.f32 %v1589, %v1597
        %v1602 = vsub.f32 %v1592, %v1600
        %v1603 = vmul.f32 %v1601, 1.442695
        %v1604 = vpow.pop %v1603
        %v1605 = vmul.f32 %v1602, 1.442695
        %v1606 = vpow.pop %v1605
        %v1607 = vsel %vm1485, %v1604, 0.0
        %1608 = vadd.xlane.f32.xlu0 %v1607
        %v1609 = vpop.xlane.xlu0 %1608
        %v1610 = vsel %vm1485, %v1606, 0.0
        %1611 = vadd.xlane.f32.xlu0 %v1610
        %v1612 = vpop.xlane.xlu0 %1611
        %v1613 = vrcp.pop %v1609
        %v1614 = vrcp.pop %v1612
        %v1615 = vmul.f32 %v1604, %v1613
        %v1616 = vmul.f32 %v1606, %v1614
        %v1617 = vpack.c.bf16 %v1616, %v1615
        %v1619 = vsel %vm1485, %v1617, 0
        %1621 = vmatprep.subr.bf16.mxu0 0
        %1622 = vmatpush1.bf16.msra.mxu0 %v1441
        %1623 = vmatprep.subr.bf16.mxu0 0
        %1624 = vmatpush1.bf16.msra.mxu0 0
        %1625 = vmatprep.subr.bf16.mxu0 0
        %1626 = vmatpush1.bf16.msra.mxu0 0
        %1627 = vmatprep.subr.bf16.mxu0 0
        %1628 = vmatpush1.bf16.msra.mxu0 0
        %1629 = vmatprep.subr.bf16.mxu0 0
        %1630 = vmatpush1.bf16.msra.mxu0 0
        %1631 = vmatprep.subr.bf16.mxu0 0
        %1632 = vmatpush1.bf16.msra.mxu0 0
        %1633 = vmatprep.subr.bf16.mxu0 0
        %1634 = vmatpush1.bf16.msra.mxu0 0
        %1635 = vmatprep.subr.bf16.mxu0 0
        %1636 = vmatpush1.bf16.msra.mxu0 0
        %1637 = vmatprep.subr.bf16.mxu0 0
        %1638 = vmatpush1.bf16.msra.mxu0 0
        %1639 = vmatprep.subr.bf16.mxu0 0
        %1640 = vmatpush1.bf16.msra.mxu0 0
        %1641 = vmatprep.subr.bf16.mxu0 0
        %1642 = vmatpush1.bf16.msra.mxu0 0
        %1643 = vmatprep.subr.bf16.mxu0 0
        %1644 = vmatpush1.bf16.msra.mxu0 0
        %1645 = vmatprep.subr.bf16.mxu0 0
        %1646 = vmatpush1.bf16.msra.mxu0 0
        %1647 = vmatprep.subr.bf16.mxu0 0
        %1648 = vmatpush1.bf16.msra.mxu0 0
        %1649 = vmatprep.subr.bf16.mxu0 0
        %1650 = vmatpush1.bf16.msra.mxu0 0
        %1651 = vmatprep.subr.bf16.mxu0 0
        %1652 = vmatpush1.bf16.msra.mxu0 0
        %1653 = vmatprep.mubr.bf16.mxu0 0
        %1654 = vmatmul.mubr.bf16.gmra.mrb[0].mxu0 %v1619
        %v1655 = vpop.f32.mrb[0].mxu0
        %v1656 = vadd.f32 0.0, %v1655
        %v1657 = vpop.f32.mrb[0].mxu0
        %v1658 = vpop.f32.mrb[0].mxu0
        %v1659 = vadd.f32 0.0, %v1658
        %v1660 = vpop.f32.mrb[0].mxu0
        %1661 = vdwg.mxu0
        %v1662 = vpack.c.bf16 %v1659, %v1656
        %1663 = vmatprep.subr.bf16.mxu0 0
        %1664 = vmatpush1.bf16.xpose.msra.mxu0 %v1438
        %1665 = vmatprep.subr.bf16.mxu0 0
        %1666 = vmatpush1.bf16.xpose.msra.mxu0 0
        %1667 = vmatprep.subr.bf16.mxu0 0
        %1668 = vmatpush1.bf16.xpose.msra.mxu0 0
        %1669 = vmatprep.subr.bf16.mxu0 0
        %1670 = vmatpush1.bf16.xpose.msra.mxu0 0
        %1671 = vmatprep.subr.bf16.mxu0 0
        %1672 = vmatpush1.bf16.xpose.msra.mxu0 0
        %1673 = vmatprep.subr.bf16.mxu0 0
        %1674 = vmatpush1.bf16.xpose.msra.mxu0 0
        %1675 = vmatprep.subr.bf16.mxu0 0
        %1676 = vmatpush1.bf16.xpose.msra.mxu0 0
        %1677 = vmatprep.subr.bf16.mxu0 0
        %1678 = vmatpush1.bf16.xpose.msra.mxu0 0
        %1679 = vmatprep.subr.bf16.mxu0 0
        %1680 = vmatpush1.bf16.xpose.msra.mxu0 0
        %1681 = vmatprep.subr.bf16.mxu0 0
        %1682 = vmatpush1.bf16.xpose.msra.mxu0 0
        %1683 = vmatprep.subr.bf16.mxu0 0
        %1684 = vmatpush1.bf16.xpose.msra.mxu0 0
        %1685 = vmatprep.subr.bf16.mxu0 0
        %1686 = vmatpush1.bf16.xpose.msra.mxu0 0
        %1687 = vmatprep.subr.bf16.mxu0 0
        %1688 = vmatpush1.bf16.xpose.msra.mxu0 0
        %1689 = vmatprep.subr.bf16.mxu0 0
        %1690 = vmatpush1.bf16.xpose.msra.mxu0 0
        %1691 = vmatprep.subr.bf16.mxu0 0
        %1692 = vmatpush1.bf16.xpose.msra.mxu0 0
        %1693 = vmatprep.subr.bf16.mxu0 0
        %1694 = vmatpush1.bf16.xpose.msra.mxu0 0
        %1695 = vmatprep.mubr.bf16.mxu0 0
        %1696 = vmatmul.mubr.bf16.gmra.mrb[0].mxu0 %v1434
        %v1697 = vpop.f32.mrb[0].mxu0
        %v1698 = vadd.f32 0.0, %v1697
        %v1699 = vpop.f32.mrb[0].mxu0
        %v1700 = vpop.f32.mrb[0].mxu0
        %v1701 = vadd.f32 0.0, %v1700
        %v1702 = vpop.f32.mrb[0].mxu0
        %1703 = vdwg.mxu0
        %v1704 = vsel %vm1485, %v1698, -inf
        %1705 = vmax.xlane.f32.xlu0 %v1704
        %v1706 = vpop.xlane.xlu0 %1705
        %v1707 = vsel %vm1485, %v1701, -inf
        %1708 = vmax.xlane.f32.xlu0 %v1707
        %v1709 = vpop.xlane.xlu0 %1708
        %v1710 = vsub.f32 %v1698, %v1706
        %v1711 = vsub.f32 %v1701, %v1709
        %v1712 = vmul.f32 %v1710, 1.442695
        %v1713 = vpow.pop %v1712
        %v1714 = vmul.f32 %v1711, 1.442695
        %v1715 = vpow.pop %v1714
        %v1716 = vsel %vm1485, %v1713, 0.0
        %1717 = vadd.xlane.f32.xlu0 %v1716
        %v1718 = vpop.xlane.xlu0 %1717
        %v1719 = vsel %vm1485, %v1715, 0.0
        %1720 = vadd.xlane.f32.xlu0 %v1719
        %v1721 = vpop.xlane.xlu0 %1720
        %v1722 = vrcp.pop %v1718
        %v1723 = vrcp.pop %v1721
        %v1724 = vmul.f32 %v1713, %v1722
        %v1725 = vmul.f32 %v1715, %v1723
        %v1726 = vpack.c.bf16 %v1725, %v1724
        %v1728 = vsel %vm1485, %v1726, 0
        %1730 = vmatprep.subr.bf16.mxu0 0
        %1731 = vmatpush1.bf16.msra.mxu0 %v1442
        %1732 = vmatprep.subr.bf16.mxu0 0
        %1733 = vmatpush1.bf16.msra.mxu0 0
        %1734 = vmatprep.subr.bf16.mxu0 0
        %1735 = vmatpush1.bf16.msra.mxu0 0
        %1736 = vmatprep.subr.bf16.mxu0 0
        %1737 = vmatpush1.bf16.msra.mxu0 0
        %1738 = vmatprep.subr.bf16.mxu0 0
        %1739 = vmatpush1.bf16.msra.mxu0 0
        %1740 = vmatprep.subr.bf16.mxu0 0
        %1741 = vmatpush1.bf16.msra.mxu0 0
        %1742 = vmatprep.subr.bf16.mxu0 0
        %1743 = vmatpush1.bf16.msra.mxu0 0
        %1744 = vmatprep.subr.bf16.mxu0 0
        %1745 = vmatpush1.bf16.msra.mxu0 0
        %1746 = vmatprep.subr.bf16.mxu0 0
        %1747 = vmatpush1.bf16.msra.mxu0 0
        %1748 = vmatprep.subr.bf16.mxu0 0
        %1749 = vmatpush1.bf16.msra.mxu0 0
        %1750 = vmatprep.subr.bf16.mxu0 0
        %1751 = vmatpush1.bf16.msra.mxu0 0
        %1752 = vmatprep.subr.bf16.mxu0 0
        %1753 = vmatpush1.bf16.msra.mxu0 0
        %1754 = vmatprep.subr.bf16.mxu0 0
        %1755 = vmatpush1.bf16.msra.mxu0 0
        %1756 = vmatprep.subr.bf16.mxu0 0
        %1757 = vmatpush1.bf16.msra.mxu0 0
        %1758 = vmatprep.subr.bf16.mxu0 0
        %1759 = vmatpush1.bf16.msra.mxu0 0
        %1760 = vmatprep.subr.bf16.mxu0 0
        %1761 = vmatpush1.bf16.msra.mxu0 0
        %1762 = vmatprep.mubr.bf16.mxu0 0
        %1763 = vmatmul.mubr.bf16.gmra.mrb[0].mxu0 %v1728
        %v1764 = vpop.f32.mrb[0].mxu0
        %v1765 = vadd.f32 0.0, %v1764
        %v1766 = vpop.f32.mrb[0].mxu0
        %v1767 = vpop.f32.mrb[0].mxu0
        %v1768 = vadd.f32 0.0, %v1767
        %v1769 = vpop.f32.mrb[0].mxu0
        %1770 = vdwg.mxu0
        %v1771 = vpack.c.bf16 %v1768, %v1765
        %1772 = vmatprep.subr.bf16.mxu0 0
        %1773 = vmatpush1.bf16.xpose.msra.mxu0 %v1439
        %1774 = vmatprep.subr.bf16.mxu0 0
        %1775 = vmatpush1.bf16.xpose.msra.mxu0 0
        %1776 = vmatprep.subr.bf16.mxu0 0
        %1777 = vmatpush1.bf16.xpose.msra.mxu0 0
        %1778 = vmatprep.subr.bf16.mxu0 0
        %1779 = vmatpush1.bf16.xpose.msra.mxu0 0
        %1780 = vmatprep.subr.bf16.mxu0 0
        %1781 = vmatpush1.bf16.xpose.msra.mxu0 0
        %1782 = vmatprep.subr.bf16.mxu0 0
        %1783 = vmatpush1.bf16.xpose.msra.mxu0 0
        %1784 = vmatprep.subr.bf16.mxu0 0
        %1785 = vmatpush1.bf16.xpose.msra.mxu0 0
        %1786 = vmatprep.subr.bf16.mxu0 0
        %1787 = vmatpush1.bf16.xpose.msra.mxu0 0
        %1788 = vmatprep.subr.bf16.mxu0 0
        %1789 = vmatpush1.bf16.xpose.msra.mxu0 0
        %1790 = vmatprep.subr.bf16.mxu0 0
        %1791 = vmatpush1.bf16.xpose.msra.mxu0 0
        %1792 = vmatprep.subr.bf16.mxu0 0
        %1793 = vmatpush1.bf16.xpose.msra.mxu0 0
        %1794 = vmatprep.subr.bf16.mxu0 0
        %1795 = vmatpush1.bf16.xpose.msra.mxu0 0
        %1796 = vmatprep.subr.bf16.mxu0 0
        %1797 = vmatpush1.bf16.xpose.msra.mxu0 0
        %1798 = vmatprep.subr.bf16.mxu0 0
        %1799 = vmatpush1.bf16.xpose.msra.mxu0 0
        %1800 = vmatprep.subr.bf16.mxu0 0
        %1801 = vmatpush1.bf16.xpose.msra.mxu0 0
        %1802 = vmatprep.subr.bf16.mxu0 0
        %1803 = vmatpush1.bf16.xpose.msra.mxu0 0
        %1804 = vmatprep.mubr.bf16.mxu0 0
        %1805 = vmatmul.mubr.bf16.gmra.mrb[0].mxu0 %v1435
        %v1806 = vpop.f32.mrb[0].mxu0
        %v1807 = vadd.f32 0.0, %v1806
        %v1808 = vpop.f32.mrb[0].mxu0
        %v1809 = vpop.f32.mrb[0].mxu0
        %v1810 = vadd.f32 0.0, %v1809
        %v1811 = vpop.f32.mrb[0].mxu0
        %1812 = vdwg.mxu0
        %v1813 = vsel %vm1485, %v1807, -inf
        %1814 = vmax.xlane.f32.xlu0 %v1813
        %v1815 = vpop.xlane.xlu0 %1814
        %v1816 = vsel %vm1485, %v1810, -inf
        %1817 = vmax.xlane.f32.xlu0 %v1816
        %v1818 = vpop.xlane.xlu0 %1817
        %v1819 = vsub.f32 %v1807, %v1815
        %v1820 = vsub.f32 %v1810, %v1818
        %v1821 = vmul.f32 %v1819, 1.442695
        %v1822 = vpow.pop %v1821
        %v1823 = vmul.f32 %v1820, 1.442695
        %v1824 = vpow.pop %v1823
        %v1825 = vsel %vm1485, %v1822, 0.0
        %1826 = vadd.xlane.f32.xlu0 %v1825
        %v1827 = vpop.xlane.xlu0 %1826
        %v1828 = vsel %vm1485, %v1824, 0.0
        %1829 = vadd.xlane.f32.xlu0 %v1828
        %v1830 = vpop.xlane.xlu0 %1829
        %v1831 = vrcp.pop %v1827
        %v1832 = vrcp.pop %v1830
        %v1833 = vmul.f32 %v1822, %v1831
        %v1834 = vmul.f32 %v1824, %v1832
        %v1835 = vpack.c.bf16 %v1834, %v1833
        %v1837 = vsel %vm1485, %v1835, 0
        %1839 = vmatprep.subr.bf16.mxu0 0
        %1840 = vmatpush1.bf16.msra.mxu0 %v1443
        %1841 = vmatprep.subr.bf16.mxu0 0
        %1842 = vmatpush1.bf16.msra.mxu0 0
        %1843 = vmatprep.subr.bf16.mxu0 0
        %1844 = vmatpush1.bf16.msra.mxu0 0
        %1845 = vmatprep.subr.bf16.mxu0 0
        %1846 = vmatpush1.bf16.msra.mxu0 0
        %1847 = vmatprep.subr.bf16.mxu0 0
        %1848 = vmatpush1.bf16.msra.mxu0 0
        %1849 = vmatprep.subr.bf16.mxu0 0
        %1850 = vmatpush1.bf16.msra.mxu0 0
        %1851 = vmatprep.subr.bf16.mxu0 0
        %1852 = vmatpush1.bf16.msra.mxu0 0
        %1853 = vmatprep.subr.bf16.mxu0 0
        %1854 = vmatpush1.bf16.msra.mxu0 0
        %1855 = vmatprep.subr.bf16.mxu0 0
        %1856 = vmatpush1.bf16.msra.mxu0 0
        %1857 = vmatprep.subr.bf16.mxu0 0
        %1858 = vmatpush1.bf16.msra.mxu0 0
        %1859 = vmatprep.subr.bf16.mxu0 0
        %1860 = vmatpush1.bf16.msra.mxu0 0
        %1861 = vmatprep.subr.bf16.mxu0 0
        %1862 = vmatpush1.bf16.msra.mxu0 0
        %1863 = vmatprep.subr.bf16.mxu0 0
        %1864 = vmatpush1.bf16.msra.mxu0 0
        %1865 = vmatprep.subr.bf16.mxu0 0
        %1866 = vmatpush1.bf16.msra.mxu0 0
        %1867 = vmatprep.subr.bf16.mxu0 0
        %1868 = vmatpush1.bf16.msra.mxu0 0
        %1869 = vmatprep.subr.bf16.mxu0 0
        %1870 = vmatpush1.bf16.msra.mxu0 0
        %1871 = vmatprep.mubr.bf16.mxu0 0
        %1872 = vmatmul.mubr.bf16.gmra.mrb[0].mxu0 %v1837
        %v1873 = vpop.f32.mrb[0].mxu0
        %v1874 = vadd.f32 0.0, %v1873
        %v1875 = vpop.f32.mrb[0].mxu0
        %v1876 = vpop.f32.mrb[0].mxu0
        %v1877 = vadd.f32 0.0, %v1876
        %v1878 = vpop.f32.mrb[0].mxu0
        %1879 = vdwg.mxu0
        %v1880 = vpack.c.bf16 %v1877, %v1874
        %v1881 = vld [vmem:[#allocation8] sm:$0xf]
        %v1882 = vld [vmem:[#allocation8 + $0x4] sm:$0xf]
        %v1883 = vld [vmem:[#allocation8 + $0x8] sm:$0xf]
        %v1884 = vld [vmem:[#allocation8 + $0xc] sm:$0xf]
        %v1885 = vld [vmem:[#allocation8 + $0x10] sm:$0xf]
        %v1886 = vld [vmem:[#allocation8 + $0x14] sm:$0xf]
        %v1887 = vld [vmem:[#allocation8 + $0x18] sm:$0xf]
        %v1888 = vld [vmem:[#allocation8 + $0x1c] sm:$0xf]
        %v1889 = vld [vmem:[#allocation8 + $0x20] sm:$0xf]
        %v1890 = vld [vmem:[#allocation8 + $0x24] sm:$0xf]
        %v1891 = vld [vmem:[#allocation8 + $0x28] sm:$0xf]
        %v1892 = vld [vmem:[#allocation8 + $0x2c] sm:$0xf]
        %v1893 = vld [vmem:[#allocation8 + $0x30] sm:$0xf]
        %v1894 = vld [vmem:[#allocation8 + $0x34] sm:$0xf]
        %v1895 = vld [vmem:[#allocation8 + $0x38] sm:$0xf]
        %v1896 = vld [vmem:[#allocation8 + $0x3c] sm:$0xf]
        %v1897 = vld [vmem:[#allocation8 + $0x40] sm:$0xf]
        %v1898 = vld [vmem:[#allocation8 + $0x44] sm:$0xf]
        %v1899 = vld [vmem:[#allocation8 + $0x48] sm:$0xf]
        %v1900 = vld [vmem:[#allocation8 + $0x4c] sm:$0xf]
        %v1901 = vld [vmem:[#allocation8 + $0x50] sm:$0xf]
        %v1902 = vld [vmem:[#allocation8 + $0x54] sm:$0xf]
        %v1903 = vld [vmem:[#allocation8 + $0x58] sm:$0xf]
        %v1904 = vld [vmem:[#allocation8 + $0x5c] sm:$0xf]
        %v1905 = vld [vmem:[#allocation8 + $0x60] sm:$0xf]
        %v1906 = vld [vmem:[#allocation8 + $0x64] sm:$0xf]
        %v1907 = vld [vmem:[#allocation8 + $0x68] sm:$0xf]
        %v1908 = vld [vmem:[#allocation8 + $0x6c] sm:$0xf]
        %v1909 = vld [vmem:[#allocation8 + $0x70] sm:$0xf]
        %v1910 = vld [vmem:[#allocation8 + $0x74] sm:$0xf]
        %v1911 = vld [vmem:[#allocation8 + $0x78] sm:$0xf]
        %v1912 = vld [vmem:[#allocation8 + $0x7c] sm:$0xf]
        %v1913 = vld [vmem:[#allocation8 + $0x80] sm:$0xf]
        %v1914 = vld [vmem:[#allocation8 + $0x84] sm:$0xf]
        %v1915 = vld [vmem:[#allocation8 + $0x88] sm:$0xf]
        %v1916 = vld [vmem:[#allocation8 + $0x8c] sm:$0xf]
        %v1917 = vld [vmem:[#allocation8 + $0x90] sm:$0xf]
        %v1918 = vld [vmem:[#allocation8 + $0x94] sm:$0xf]
        %v1919 = vld [vmem:[#allocation8 + $0x98] sm:$0xf]
        %v1920 = vld [vmem:[#allocation8 + $0x9c] sm:$0xf]
        %v1921 = vld [vmem:[#allocation8 + $0xa0] sm:$0xf]
        %v1922 = vld [vmem:[#allocation8 + $0xa4] sm:$0xf]
        %v1923 = vld [vmem:[#allocation8 + $0xa8] sm:$0xf]
        %v1924 = vld [vmem:[#allocation8 + $0xac] sm:$0xf]
        %v1925 = vld [vmem:[#allocation8 + $0xb0] sm:$0xf]
        %v1926 = vld [vmem:[#allocation8 + $0xb4] sm:$0xf]
        %v1927 = vld [vmem:[#allocation8 + $0xb8] sm:$0xf]
        %v1928 = vld [vmem:[#allocation8 + $0xbc] sm:$0xf]
        %v1929 = vld [vmem:[#allocation8 + $0xc0] sm:$0xf]
        %v1930 = vld [vmem:[#allocation8 + $0xc4] sm:$0xf]
        %v1931 = vld [vmem:[#allocation8 + $0xc8] sm:$0xf]
        %v1932 = vld [vmem:[#allocation8 + $0xcc] sm:$0xf]
        %v1933 = vld [vmem:[#allocation8 + $0xd0] sm:$0xf]
        %v1934 = vld [vmem:[#allocation8 + $0xd4] sm:$0xf]
        %v1935 = vld [vmem:[#allocation8 + $0xd8] sm:$0xf]
        %v1936 = vld [vmem:[#allocation8 + $0xdc] sm:$0xf]
        %v1937 = vld [vmem:[#allocation8 + $0xe0] sm:$0xf]
        %v1938 = vld [vmem:[#allocation8 + $0xe4] sm:$0xf]
        %v1939 = vld [vmem:[#allocation8 + $0xe8] sm:$0xf]
        %v1940 = vld [vmem:[#allocation8 + $0xec] sm:$0xf]
        %v1941 = vld [vmem:[#allocation8 + $0xf0] sm:$0xf]
        %v1942 = vld [vmem:[#allocation8 + $0xf4] sm:$0xf]
        %v1943 = vld [vmem:[#allocation8 + $0xf8] sm:$0xf]
        %v1944 = vld [vmem:[#allocation8 + $0xfc] sm:$0xf]
        %v1945 = vld [vmem:[%s4] sm:$0x1]
        %v1947 = vlaneseq
        %v1948 = vshrl.u32 %v1947, 7
        %v1949 = vsub.s32 0, %v1948
        %v1950 = vrot.slane %v1945, %v1949
        %v2016 = vunpack.c.l.b16 %v1881
        %v2017 = vunpack.c.l.b16 %v1882
        %v2018 = vunpack.c.l.b16 %v1883
        %v2019 = vunpack.c.l.b16 %v1884
        %v2020 = vunpack.c.l.b16 %v1885
        %v2021 = vunpack.c.l.b16 %v1886
        %v2022 = vunpack.c.l.b16 %v1887
        %v2023 = vunpack.c.l.b16 %v1888
        %v2024 = vunpack.c.l.b16 %v1889
        %v2025 = vunpack.c.l.b16 %v1890
        %v2026 = vunpack.c.l.b16 %v1891
        %v2027 = vunpack.c.l.b16 %v1892
        %v2028 = vunpack.c.l.b16 %v1893
        %v2029 = vunpack.c.l.b16 %v1894
        %v2030 = vunpack.c.l.b16 %v1895
        %v2031 = vunpack.c.l.b16 %v1896
        %v2032 = vunpack.c.l.b16 %v1897
        %v2033 = vunpack.c.l.b16 %v1898
        %v2034 = vunpack.c.l.b16 %v1899
        %v2035 = vunpack.c.l.b16 %v1900
        %v2036 = vunpack.c.l.b16 %v1901
        %v2037 = vunpack.c.l.b16 %v1902
        %v2038 = vunpack.c.l.b16 %v1903
        %v2039 = vunpack.c.l.b16 %v1904
        %v2040 = vunpack.c.l.b16 %v1905
        %v2041 = vunpack.c.l.b16 %v1906
        %v2042 = vunpack.c.l.b16 %v1907
        %v2043 = vunpack.c.l.b16 %v1908
        %v2044 = vunpack.c.l.b16 %v1909
        %v2045 = vunpack.c.l.b16 %v1910
        %v2046 = vunpack.c.l.b16 %v1911
        %v2047 = vunpack.c.l.b16 %v1912
        %v2048 = vunpack.c.l.b16 %v1913
        %v2049 = vunpack.c.l.b16 %v1914
        %v2050 = vunpack.c.l.b16 %v1915
        %v2051 = vunpack.c.l.b16 %v1916
        %v2052 = vunpack.c.l.b16 %v1917
        %v2053 = vunpack.c.l.b16 %v1918
        %v2054 = vunpack.c.l.b16 %v1919
        %v2055 = vunpack.c.l.b16 %v1920
        %v2056 = vunpack.c.l.b16 %v1921
        %v2057 = vunpack.c.l.b16 %v1922
        %v2058 = vunpack.c.l.b16 %v1923
        %v2059 = vunpack.c.l.b16 %v1924
        %v2060 = vunpack.c.l.b16 %v1925
        %v2061 = vunpack.c.l.b16 %v1926
        %v2062 = vunpack.c.l.b16 %v1927
        %v2063 = vunpack.c.l.b16 %v1928
        %v2064 = vunpack.c.l.b16 %v1929
        %v2065 = vunpack.c.l.b16 %v1930
        %v2066 = vunpack.c.l.b16 %v1931
        %v2067 = vunpack.c.l.b16 %v1932
        %v2068 = vunpack.c.l.b16 %v1933
        %v2069 = vunpack.c.l.b16 %v1934
        %v2070 = vunpack.c.l.b16 %v1935
        %v2071 = vunpack.c.l.b16 %v1936
        %v2072 = vunpack.c.l.b16 %v1937
        %v2073 = vunpack.c.l.b16 %v1938
        %v2074 = vunpack.c.l.b16 %v1939
        %v2075 = vunpack.c.l.b16 %v1940
        %v2076 = vunpack.c.l.b16 %v1941
        %v2077 = vunpack.c.l.b16 %v1942
        %v2078 = vunpack.c.l.b16 %v1943
        %v2079 = vunpack.c.l.b16 %v1944
        %v2080 = vpack.c.b16 %v2017, %v2016
        %v2081 = vpack.c.b16 %v2019, %v2018
        %v2082 = vpack.c.b16 %v2021, %v2020
        %v2083 = vpack.c.b16 %v2023, %v2022
        %v2084 = vpack.c.b16 %v2025, %v2024
        %v2085 = vpack.c.b16 %v2027, %v2026
        %v2086 = vpack.c.b16 %v2029, %v2028
        %v2087 = vpack.c.b16 %v2031, %v2030
        %v2088 = vpack.c.b16 %v2033, %v2032
        %v2089 = vpack.c.b16 %v2035, %v2034
        %v2090 = vpack.c.b16 %v2037, %v2036
        %v2091 = vpack.c.b16 %v2039, %v2038
        %v2092 = vpack.c.b16 %v2041, %v2040
        %v2093 = vpack.c.b16 %v2043, %v2042
        %v2094 = vpack.c.b16 %v2045, %v2044
        %v2095 = vpack.c.b16 %v2047, %v2046
        %v2096 = vpack.c.b16 %v2049, %v2048
        %v2097 = vpack.c.b16 %v2051, %v2050
        %v2098 = vpack.c.b16 %v2053, %v2052
        %v2099 = vpack.c.b16 %v2055, %v2054
        %v2100 = vpack.c.b16 %v2057, %v2056
        %v2101 = vpack.c.b16 %v2059, %v2058
        %v2102 = vpack.c.b16 %v2061, %v2060
        %v2103 = vpack.c.b16 %v2063, %v2062
        %v2104 = vpack.c.b16 %v2065, %v2064
        %v2105 = vpack.c.b16 %v2067, %v2066
        %v2106 = vpack.c.b16 %v2069, %v2068
        %v2107 = vpack.c.b16 %v2071, %v2070
        %v2108 = vpack.c.b16 %v2073, %v2072
        %v2109 = vpack.c.b16 %v2075, %v2074
        %v2110 = vpack.c.b16 %v2077, %v2076
        %v2111 = vpack.c.b16 %v2079, %v2078
        %2144 = vmatprep.subr.bf16.mxu0 0
        %2145 = vmatpush1.bf16.msra.mxu0 %v2080
        %2146 = vmatprep.subr.bf16.mxu0 0
        %2147 = vmatpush1.bf16.msra.mxu0 %v2081
        %2148 = vmatprep.subr.bf16.mxu0 0
        %2149 = vmatpush1.bf16.msra.mxu0 %v2082
        %2150 = vmatprep.subr.bf16.mxu0 0
        %2151 = vmatpush1.bf16.msra.mxu0 %v2083
        %2152 = vmatprep.subr.bf16.mxu0 0
        %2153 = vmatpush1.bf16.msra.mxu0 %v2084
        %2154 = vmatprep.subr.bf16.mxu0 0
        %2155 = vmatpush1.bf16.msra.mxu0 %v2085
        %2156 = vmatprep.subr.bf16.mxu0 0
        %2157 = vmatpush1.bf16.msra.mxu0 %v2086
        %2158 = vmatprep.subr.bf16.mxu0 0
        %2159 = vmatpush1.bf16.msra.mxu0 %v2087
        %2160 = vmatprep.subr.bf16.mxu0 0
        %2161 = vmatpush1.bf16.msra.mxu0 %v2088
        %2162 = vmatprep.subr.bf16.mxu0 0
        %2163 = vmatpush1.bf16.msra.mxu0 %v2089
        %2164 = vmatprep.subr.bf16.mxu0 0
        %2165 = vmatpush1.bf16.msra.mxu0 %v2090
        %2166 = vmatprep.subr.bf16.mxu0 0
        %2167 = vmatpush1.bf16.msra.mxu0 %v2091
        %2168 = vmatprep.subr.bf16.mxu0 0
        %2169 = vmatpush1.bf16.msra.mxu0 %v2092
        %2170 = vmatprep.subr.bf16.mxu0 0
        %2171 = vmatpush1.bf16.msra.mxu0 %v2093
        %2172 = vmatprep.subr.bf16.mxu0 0
        %2173 = vmatpush1.bf16.msra.mxu0 %v2094
        %2174 = vmatprep.subr.bf16.mxu0 0
        %2175 = vmatpush1.bf16.msra.mxu0 %v2095
        %2176 = vmatprep.mubr.bf16.mxu0 %v1662
        %2177 = vmatmul.mubr.bf16.gmra.mrb[0].mxu0 %v1553
        %v2178 = vpop.f32.mrb[0].mxu0
        %v2179 = vadd.f32 %v1950, %v2178
        %v2180 = vpop.f32.mrb[0].mxu0
        %v2181 = vpop.f32.mrb[0].mxu0
        %v2182 = vadd.f32 %v1950, %v2181
        %v2183 = vpop.f32.mrb[0].mxu0
        %2184 = vdwg.mxu0
        %2185 = vmatprep.subr.bf16.mxu0 0
        %2186 = vmatpush1.bf16.msra.mxu0 %v2096
        %2187 = vmatprep.subr.bf16.mxu0 0
        %2188 = vmatpush1.bf16.msra.mxu0 %v2097
        %2189 = vmatprep.subr.bf16.mxu0 0
        %2190 = vmatpush1.bf16.msra.mxu0 %v2098
        %2191 = vmatprep.subr.bf16.mxu0 0
        %2192 = vmatpush1.bf16.msra.mxu0 %v2099
        %2193 = vmatprep.subr.bf16.mxu0 0
        %2194 = vmatpush1.bf16.msra.mxu0 %v2100
        %2195 = vmatprep.subr.bf16.mxu0 0
        %2196 = vmatpush1.bf16.msra.mxu0 %v2101
        %2197 = vmatprep.subr.bf16.mxu0 0
        %2198 = vmatpush1.bf16.msra.mxu0 %v2102
        %2199 = vmatprep.subr.bf16.mxu0 0
        %2200 = vmatpush1.bf16.msra.mxu0 %v2103
        %2201 = vmatprep.subr.bf16.mxu0 0
        %2202 = vmatpush1.bf16.msra.mxu0 %v2104
        %2203 = vmatprep.subr.bf16.mxu0 0
        %2204 = vmatpush1.bf16.msra.mxu0 %v2105
        %2205 = vmatprep.subr.bf16.mxu0 0
        %2206 = vmatpush1.bf16.msra.mxu0 %v2106
        %2207 = vmatprep.subr.bf16.mxu0 0
        %2208 = vmatpush1.bf16.msra.mxu0 %v2107
        %2209 = vmatprep.subr.bf16.mxu0 0
        %2210 = vmatpush1.bf16.msra.mxu0 %v2108
        %2211 = vmatprep.subr.bf16.mxu0 0
        %2212 = vmatpush1.bf16.msra.mxu0 %v2109
        %2213 = vmatprep.subr.bf16.mxu0 0
        %2214 = vmatpush1.bf16.msra.mxu0 %v2110
        %2215 = vmatprep.subr.bf16.mxu0 0
        %2216 = vmatpush1.bf16.msra.mxu0 %v2111
        %2217 = vmatprep.mubr.bf16.mxu0 %v1880
        %2218 = vmatmul.mubr.bf16.gmra.mrb[0].mxu0 %v1771
        %v2219 = vpop.f32.mrb[0].mxu0
        %v2220 = vadd.f32 %v2179, %v2219
        %v2221 = vpop.f32.mrb[0].mxu0
        %v2222 = vpop.f32.mrb[0].mxu0
        %v2223 = vadd.f32 %v2182, %v2222
        %v2224 = vpop.f32.mrb[0].mxu0
        %2225 = vdwg.mxu0
        %v2226 = vlaneseq
        %v2227 = vand.u32 %v2226, 127
        %vm2228 = vcmp.lt.s32.totalorder %v2227, 32
        %v2229 = vsel %vm2228, 1, 0
        %v2230 = vcvt.s32.f32 %v2229
        %v2231 = vadd.f32 %v531, %v2220
        %v2232 = vadd.f32 %v532, %v2223
        %v2233 = vld [vmem:[%s9] sm:$0x1]
        %v2234 = vld [vmem:[%s10] sm:$0x1]
        %2235 = vadd.xlane.f32.xlu0 %v2231
        %v2236 = vpop.xlane.xlu0 %2235
        %2237 = vadd.xlane.f32.xlu0 %v2232
        %v2238 = vpop.xlane.xlu0 %2237
        %v2239 = vmul.f32 %v2236, 0.03125
        %v2240 = vmul.f32 %v2238, 0.03125
        %v2241 = vsub.f32 %v2231, %v2239
        %v2242 = vsub.f32 %v2232, %v2240
        %v2243 = vmul.f32 %v2241, %v2230
        %v2244 = vmul.f32 %v2242, %v2230
        %v2245 = vmul.f32 %v2243, %v2243
        %v2246 = vmul.f32 %v2244, %v2244
        %2247 = vadd.xlane.f32.xlu0 %v2245
        %v2248 = vpop.xlane.xlu0 %2247
        %2249 = vadd.xlane.f32.xlu0 %v2246
        %v2250 = vpop.xlane.xlu0 %2249
        %v2251 = vmul.f32 %v2248, 0.03125
        %v2252 = vmul.f32 %v2250, 0.03125
        %v2253 = vadd.f32 %v2251, 1e-05
        %v2254 = vadd.f32 %v2252, 1e-05
        %v2255 = vrsqrt.pop %v2253
        %v2256 = vrsqrt.pop %v2254
        %v2257 = vmul.f32 %v2241, %v2255
        %v2258 = vmul.f32 %v2242, %v2256
        %v2260 = vlaneseq
        %v2261 = vshrl.u32 %v2260, 7
        %v2262 = vsub.s32 0, %v2261
        %v2263 = vrot.slane %v2233, %v2262
        %v2265 = vmul.f32 %v2257, %v2263
        %v2266 = vmul.f32 %v2258, %v2263
        %v2268 = vlaneseq
        %v2269 = vshrl.u32 %v2268, 7
        %v2270 = vsub.s32 0, %v2269
        %v2271 = vrot.slane %v2234, %v2270
        %v2273 = vadd.f32 %v2265, %v2271
        %v2274 = vadd.f32 %v2266, %v2271
        %v2275 = vpack.c.bf16 %v2274, %v2273
        %v2276 = vld [vmem:[#allocation10] sm:$0xf]
        %v2277 = vld [vmem:[#allocation10 + $0x4] sm:$0xf]
        %v2278 = vld [vmem:[#allocation10 + $0x8] sm:$0xf]
        %v2279 = vld [vmem:[#allocation10 + $0xc] sm:$0xf]
        %v2280 = vld [vmem:[#allocation10 + $0x10] sm:$0xf]
        %v2281 = vld [vmem:[#allocation10 + $0x14] sm:$0xf]
        %v2282 = vld [vmem:[#allocation10 + $0x18] sm:$0xf]
        %v2283 = vld [vmem:[#allocation10 + $0x1c] sm:$0xf]
        %v2284 = vld [vmem:[#allocation10 + $0x20] sm:$0xf]
        %v2285 = vld [vmem:[#allocation10 + $0x24] sm:$0xf]
        %v2286 = vld [vmem:[#allocation10 + $0x28] sm:$0xf]
        %v2287 = vld [vmem:[#allocation10 + $0x2c] sm:$0xf]
        %v2288 = vld [vmem:[#allocation10 + $0x30] sm:$0xf]
        %v2289 = vld [vmem:[#allocation10 + $0x34] sm:$0xf]
        %v2290 = vld [vmem:[#allocation10 + $0x38] sm:$0xf]
        %v2291 = vld [vmem:[#allocation10 + $0x3c] sm:$0xf]
        %v2292 = vld [vmem:[%s6] sm:$0x1]
        %v2294 = vlaneseq
        %v2295 = vshrl.u32 %v2294, 7
        %v2296 = vsub.s32 0, %v2295
        %v2297 = vrot.slane %v2292, %v2296
        %v2315 = vunpack.c.l.b16 %v2276
        %v2316 = vunpack.c.l.b16 %v2277
        %v2317 = vunpack.c.l.b16 %v2278
        %v2318 = vunpack.c.l.b16 %v2279
        %v2319 = vunpack.c.l.b16 %v2280
        %v2320 = vunpack.c.l.b16 %v2281
        %v2321 = vunpack.c.l.b16 %v2282
        %v2322 = vunpack.c.l.b16 %v2283
        %v2323 = vunpack.c.l.b16 %v2284
        %v2324 = vunpack.c.l.b16 %v2285
        %v2325 = vunpack.c.l.b16 %v2286
        %v2326 = vunpack.c.l.b16 %v2287
        %v2327 = vunpack.c.l.b16 %v2288
        %v2328 = vunpack.c.l.b16 %v2289
        %v2329 = vunpack.c.l.b16 %v2290
        %v2330 = vunpack.c.l.b16 %v2291
        %v2331 = vpack.c.b16 %v2316, %v2315
        %v2332 = vpack.c.b16 %v2318, %v2317
        %v2333 = vpack.c.b16 %v2320, %v2319
        %v2334 = vpack.c.b16 %v2322, %v2321
        %v2335 = vpack.c.b16 %v2324, %v2323
        %v2336 = vpack.c.b16 %v2326, %v2325
        %v2337 = vpack.c.b16 %v2328, %v2327
        %v2338 = vpack.c.b16 %v2330, %v2329
        %2347 = vmatprep.subr.bf16.mxu0 0
        %2348 = vmatpush1.bf16.msra.mxu0 %v2331
        %2349 = vmatprep.subr.bf16.mxu0 0
        %2350 = vmatpush1.bf16.msra.mxu0 %v2332
        %2351 = vmatprep.subr.bf16.mxu0 0
        %2352 = vmatpush1.bf16.msra.mxu0 %v2333
        %2353 = vmatprep.subr.bf16.mxu0 0
        %2354 = vmatpush1.bf16.msra.mxu0 %v2334
        %2355 = vmatprep.subr.bf16.mxu0 0
        %2356 = vmatpush1.bf16.msra.mxu0 %v2335
        %2357 = vmatprep.subr.bf16.mxu0 0
        %2358 = vmatpush1.bf16.msra.mxu0 %v2336
        %2359 = vmatprep.subr.bf16.mxu0 0
        %2360 = vmatpush1.bf16.msra.mxu0 %v2337
        %2361 = vmatprep.subr.bf16.mxu0 0
        %2362 = vmatpush1.bf16.msra.mxu0 %v2338
        %2363 = vmatprep.subr.bf16.mxu0 0
        %2364 = vmatpush1.bf16.msra.mxu0 0
        %2365 = vmatprep.subr.bf16.mxu0 0
        %2366 = vmatpush1.bf16.msra.mxu0 0
        %2367 = vmatprep.subr.bf16.mxu0 0
        %2368 = vmatpush1.bf16.msra.mxu0 0
        %2369 = vmatprep.subr.bf16.mxu0 0
        %2370 = vmatpush1.bf16.msra.mxu0 0
        %2371 = vmatprep.subr.bf16.mxu0 0
        %2372 = vmatpush1.bf16.msra.mxu0 0
        %2373 = vmatprep.subr.bf16.mxu0 0
        %2374 = vmatpush1.bf16.msra.mxu0 0
        %2375 = vmatprep.subr.bf16.mxu0 0
        %2376 = vmatpush1.bf16.msra.mxu0 0
        %2377 = vmatprep.subr.bf16.mxu0 0
        %2378 = vmatpush1.bf16.msra.mxu0 0
        %2379 = vmatprep.mubr.bf16.mxu0 0
        %2380 = vmatmul.mubr.bf16.gmra.mrb[0].mxu0 %v2275
        %v2381 = vpop.f32.mrb[0].mxu0
        %v2382 = vadd.f32 %v2297, %v2381
        %v2383 = vpop.f32.mrb[0].mxu0
        %v2384 = vpop.f32.mrb[0].mxu0
        %v2385 = vadd.f32 %v2297, %v2384
        %v2386 = vpop.f32.mrb[0].mxu0
        %2387 = vdwg.mxu0
        %v2388 = vmax.f32 %v2382, 0.0
        %v2389 = vmax.f32 %v2385, 0.0
        %v2390 = vpack.c.bf16 %v2389, %v2388
        %v2391 = vld [vmem:[#allocation11] sm:$0xf]
        %v2392 = vld [vmem:[#allocation11 + $0x4] sm:$0xf]
        %v2393 = vld [vmem:[#allocation11 + $0x8] sm:$0xf]
        %v2394 = vld [vmem:[#allocation11 + $0xc] sm:$0xf]
        %v2395 = vld [vmem:[#allocation11 + $0x10] sm:$0xf]
        %v2396 = vld [vmem:[#allocation11 + $0x14] sm:$0xf]
        %v2397 = vld [vmem:[#allocation11 + $0x18] sm:$0xf]
        %v2398 = vld [vmem:[#allocation11 + $0x1c] sm:$0xf]
        %v2399 = vld [vmem:[#allocation11 + $0x20] sm:$0xf]
        %v2400 = vld [vmem:[#allocation11 + $0x24] sm:$0xf]
        %v2401 = vld [vmem:[#allocation11 + $0x28] sm:$0xf]
        %v2402 = vld [vmem:[#allocation11 + $0x2c] sm:$0xf]
        %v2403 = vld [vmem:[#allocation11 + $0x30] sm:$0xf]
        %v2404 = vld [vmem:[#allocation11 + $0x34] sm:$0xf]
        %v2405 = vld [vmem:[#allocation11 + $0x38] sm:$0xf]
        %v2406 = vld [vmem:[#allocation11 + $0x3c] sm:$0xf]
        %v2407 = vld [vmem:[%s8] sm:$0x1]
        %v2409 = vlaneseq
        %v2410 = vshrl.u32 %v2409, 7
        %v2411 = vsub.s32 0, %v2410
        %v2412 = vrot.slane %v2407, %v2411
        %v2430 = vunpack.c.l.b16 %v2391
        %v2431 = vunpack.c.l.b16 %v2392
        %v2432 = vunpack.c.l.b16 %v2393
        %v2433 = vunpack.c.l.b16 %v2394
        %v2434 = vunpack.c.l.b16 %v2395
        %v2435 = vunpack.c.l.b16 %v2396
        %v2436 = vunpack.c.l.b16 %v2397
        %v2437 = vunpack.c.l.b16 %v2398
        %v2438 = vunpack.c.l.b16 %v2399
        %v2439 = vunpack.c.l.b16 %v2400
        %v2440 = vunpack.c.l.b16 %v2401
        %v2441 = vunpack.c.l.b16 %v2402
        %v2442 = vunpack.c.l.b16 %v2403
        %v2443 = vunpack.c.l.b16 %v2404
        %v2444 = vunpack.c.l.b16 %v2405
        %v2445 = vunpack.c.l.b16 %v2406
        %v2446 = vpack.c.b16 %v2431, %v2430
        %v2447 = vpack.c.b16 %v2433, %v2432
        %v2448 = vpack.c.b16 %v2435, %v2434
        %v2449 = vpack.c.b16 %v2437, %v2436
        %v2450 = vpack.c.b16 %v2439, %v2438
        %v2451 = vpack.c.b16 %v2441, %v2440
        %v2452 = vpack.c.b16 %v2443, %v2442
        %v2453 = vpack.c.b16 %v2445, %v2444
        %2462 = vmatprep.subr.bf16.mxu0 0
        %2463 = vmatpush1.bf16.msra.mxu0 %v2446
        %2464 = vmatprep.subr.bf16.mxu0 0
        %2465 = vmatpush1.bf16.msra.mxu0 %v2447
        %2466 = vmatprep.subr.bf16.mxu0 0
        %2467 = vmatpush1.bf16.msra.mxu0 %v2448
        %2468 = vmatprep.subr.bf16.mxu0 0
        %2469 = vmatpush1.bf16.msra.mxu0 %v2449
        %2470 = vmatprep.subr.bf16.mxu0 0
        %2471 = vmatpush1.bf16.msra.mxu0 %v2450
        %2472 = vmatprep.subr.bf16.mxu0 0
        %2473 = vmatpush1.bf16.msra.mxu0 %v2451
        %2474 = vmatprep.subr.bf16.mxu0 0
        %2475 = vmatpush1.bf16.msra.mxu0 %v2452
        %2476 = vmatprep.subr.bf16.mxu0 0
        %2477 = vmatpush1.bf16.msra.mxu0 %v2453
        %2478 = vmatprep.subr.bf16.mxu0 0
        %2479 = vmatpush1.bf16.msra.mxu0 0
        %2480 = vmatprep.subr.bf16.mxu0 0
        %2481 = vmatpush1.bf16.msra.mxu0 0
        %2482 = vmatprep.subr.bf16.mxu0 0
        %2483 = vmatpush1.bf16.msra.mxu0 0
        %2484 = vmatprep.subr.bf16.mxu0 0
        %2485 = vmatpush1.bf16.msra.mxu0 0
        %2486 = vmatprep.subr.bf16.mxu0 0
        %2487 = vmatpush1.bf16.msra.mxu0 0
        %2488 = vmatprep.subr.bf16.mxu0 0
        %2489 = vmatpush1.bf16.msra.mxu0 0
        %2490 = vmatprep.subr.bf16.mxu0 0
        %2491 = vmatpush1.bf16.msra.mxu0 0
        %2492 = vmatprep.subr.bf16.mxu0 0
        %2493 = vmatpush1.bf16.msra.mxu0 0
        %2494 = vmatprep.mubr.bf16.mxu0 0
        %2495 = vmatmul.mubr.bf16.gmra.mrb[0].mxu0 %v2390
        %v2496 = vpop.f32.mrb[0].mxu0
        %v2497 = vadd.f32 %v2412, %v2496
        %v2498 = vpop.f32.mrb[0].mxu0
        %v2499 = vpop.f32.mrb[0].mxu0
        %v2500 = vadd.f32 %v2412, %v2499
        %v2501 = vpop.f32.mrb[0].mxu0
        %2502 = vdwg.mxu0
        %v2503 = vadd.f32 %v2273, %v2497
        %v2504 = vadd.f32 %v2274, %v2500
        %v2505 = vld [vmem:[%s11] sm:$0x1]
        %v2506 = vld [vmem:[%s12] sm:$0x1]
        %2507 = vadd.xlane.f32.xlu0 %v2503
        %v2508 = vpop.xlane.xlu0 %2507
        %2509 = vadd.xlane.f32.xlu0 %v2504
        %v2510 = vpop.xlane.xlu0 %2509
        %v2511 = vmul.f32 %v2508, 0.03125
        %v2512 = vmul.f32 %v2510, 0.03125
        %v2513 = vsub.f32 %v2503, %v2511
        %v2514 = vsub.f32 %v2504, %v2512
        %v2515 = vmul.f32 %v2513, %v2230
        %v2516 = vmul.f32 %v2514, %v2230
        %v2517 = vmul.f32 %v2515, %v2515
        %v2518 = vmul.f32 %v2516, %v2516
        %2519 = vadd.xlane.f32.xlu0 %v2517
        %v2520 = vpop.xlane.xlu0 %2519
        %2521 = vadd.xlane.f32.xlu0 %v2518
        %v2522 = vpop.xlane.xlu0 %2521
        %v2523 = vmul.f32 %v2520, 0.03125
        %v2524 = vmul.f32 %v2522, 0.03125
        %v2525 = vadd.f32 %v2523, 1e-05
        %v2526 = vadd.f32 %v2524, 1e-05
        %v2527 = vrsqrt.pop %v2525
        %v2528 = vrsqrt.pop %v2526
        %v2529 = vmul.f32 %v2513, %v2527
        %v2530 = vmul.f32 %v2514, %v2528
        %v2532 = vlaneseq
        %v2533 = vshrl.u32 %v2532, 7
        %v2534 = vsub.s32 0, %v2533
        %v2535 = vrot.slane %v2505, %v2534
        %v2537 = vmul.f32 %v2529, %v2535
        %v2538 = vmul.f32 %v2530, %v2535
        %v2540 = vlaneseq
        %v2541 = vshrl.u32 %v2540, 7
        %v2542 = vsub.s32 0, %v2541
        %v2543 = vrot.slane %v2506, %v2542
        %v2545 = vadd.f32 %v2537, %v2543
        %v2546 = vadd.f32 %v2538, %v2543
        %2547 = vst [vmem:[%s529] sm:$0xff] %v2545
        %2548 = vst [vmem:[%s529 + $0x8] sm:$0xff] %v2546
        %s2549 = sand.u32 %s319, 1
        %s2550 = scalar_lea.sflag [#allocation4], %s2549
        %s2551 = sand.u32 %s319, 1
        %s2552 = smul.addr %s2551, 16
        %s2553 = scalar_lea.vmem [#allocation13], %s2552
        // Predicated region
        $region97: #{tpu_custom_call.1} parent=71 // pred_check
          %p2554 = pneg %p329
        $region98: #{tpu_custom_call.1} parent=71 // pred_check_branch
          %2556 = sbr.rel (%p2554) target = $region100
        $region99: #{tpu_custom_call.1} parent=71 // pred_region
          %s2558 = ssub.s32 256, 256
          %2559 = vsyncadd %s2550, %s2558
          %s2560 = smul.addr %s33, 2
          %s2561 = smul.addr %s2560, 128
          %s2562 = scalar_lea.hbm %s13, %s2561
          %s2563 = sshll.u32 %s2553, 4
          %s2564 = int_to_ptr.vmem [resolvable:$true] %s2563
          %2569 = dma.vmem_to_hbm [thread:$0]  %s2564, 256, %s2562, %s2550, 128, 128, 8
        $region100: #{tpu_custom_call.1} parent=71 // pred_fallthru
          _
      $region72: #{tpu_custom_call.1} parent=5 // pred_fallthru
        _
      %p2570 = scmp.le.s32.totalorder 2, %s28
      // Predicated region
      $region101: #{tpu_custom_call.1} parent=5 // pred_check
        %p2571 = pneg %p2570
      $region102: #{tpu_custom_call.1} parent=5 // pred_check_branch
        %2573 = sbr.rel (%p2571) target = $region104
      $region103: #{tpu_custom_call.1} parent=5 // pred_region
        %s2574 = ssub.s32 %s28, 2
        // Predicated region
        $region105: #{tpu_custom_call.1} parent=103 // pred_check
          %p2575 = pneg %p335
        $region106: #{tpu_custom_call.1} parent=103 // pred_check_branch
          %2577 = sbr.rel (%p2575) target = $region108
        $region107: #{tpu_custom_call.1} parent=103 // pred_region
          %s2578 = sand.u32 %s320, 1
          %s2579 = scalar_lea.sflag [#allocation4], %s2578
          %s2580 = sand.u32 %s320, 1
          %s2581 = smul.addr %s2580, 16
          %s2582 = scalar_lea.vmem [#allocation13], %s2581
          %2583 = dma.done %s2579, 256
        $region108: #{tpu_custom_call.1} parent=103 // pred_fallthru
          _
      $region104: #{tpu_custom_call.1} parent=5 // pred_fallthru
        _
    $region6: #{tpu_custom_call.1} parent=1 // loop_footer
      %s32 = sadd.s32 1, %s28
    $region7: #{tpu_custom_call.1} parent=1 // loop_footer_branch
      %27 = sbr.rel target = $region3
    $region8: #{tpu_custom_call.1} parent=1 // loop_exit
      _
    %2584 = vsyncpa [#allocation3], 1
    %s2585 = scalar_lea.sflag [#allocation3], 1
    %2586 = vsyncpa %s2585, 1
    %2587 = vsyncpa [#allocation6], 1
    %2588 = vsyncpa [#allocation9], 1
    %2589 = vsyncpa [#allocation12], 1
    %2590 = vsyncpa [#allocation4], 1
    %s2591 = scalar_lea.sflag [#allocation4], 1
    %2592 = vsyncpa %s2591, 1

</llo_original>
